<compile_context>
chip_gen: v7x
topology: tpu7x:2x2x1
jax: 0.10.0
libtpu: 0.0.40
codegen_flags: <defaults>
</compile_context>

<pallas_src>
import math

import numpy as np
import jax
import jax.numpy as jnp
from jax.experimental import pallas as pl
from jax.experimental.pallas import tpu as pltpu

# ----------------------------- static configuration -----------------------------
N        = 512          # number of nodes (small demo; divisible by TN)
D        = 8            # fixed in-degree (mailbox size)
IN_DIM   = 32           # in_dim == out_dim -> residual stays enabled
OUT_DIM  = 32
EDGE_DIM = 16
EIG_DIM  = 4            # eigenvector features per node; dir aggregator uses column 1
G        = 4            # nodes packed per 128-lane row
LANES    = G * IN_DIM   # 128
NP       = N // G       # packed node rows
TN       = 256          # nodes per grid step
TNP      = TN // G      # packed rows per grid step
NT       = N // TN      # grid size (node tiles)
EPS      = 1e-8
AVG_D_LOG = 2.0
SCALE_AMP = math.log(D + 1) / AVG_D_LOG      # scale_amplification (D fixed -> scalar)
BN_EPS   = 1e-5
POST_IN  = (3 * 2 + 1) * IN_DIM              # 224 (unfolded posttrans input width)

EDGE_K    = 64                               # per-edge operand [h_src(32)|ef(16)|pad(16)]
MSG_LANES = G * EDGE_K                       # 256

# weight-slab row offsets (all blocks are 128 output lanes wide, bf16)
OFF_MSG   = 0                                # (256,128) block-diag pretrans (src|ef)
OFF_DST   = OFF_MSG + G * EDGE_K             # 256  : (128,128) pretrans dst block
OFF_PH    = OFF_DST + LANES                  # 384  : posttrans  h     block
OFF_PMEAN = OFF_PH + LANES                   # 512  : posttrans  mean  block (scaler folded)
OFF_PMAX  = OFF_PMEAN + LANES                # 640  : posttrans  max   block (scaler folded)
OFF_PDIR  = OFF_PMAX + LANES                 # 768  : posttrans  dir   block (scaler folded)
W_ROWS    = OFF_PDIR + LANES                 # 896

assert N % TN == 0 and TN % (8 * G) == 0


# --------------------------------- Pallas kernel ---------------------------------
def dgn_kernel(node_ref, msg_ref, wn_ref, w_ref, out_ref):
    f32, bf16 = jnp.float32, jnp.bfloat16
    tnp = node_ref.shape[1]                              # packed rows in this tile

    h          = node_ref[0]                             # (tnp,128) f32, 4 nodes/row
    wn_tot     = node_ref[1]                             # sum_d wn_d  (per node, packed)
    post_scale = node_ref[2]                             # snorm * BN scale (per node)
    post_bias  = node_ref[3]                             # biases + BN shift, folded
    h_bf = h.astype(bf16)

    # pretrans dst-term (+ bias folded downstream); identical across a node's D
    # in-edges, so it is added to the aggregates once (exact for mean/max/dir).
    hdst = jnp.dot(h_bf, w_ref[OFF_DST:OFF_PH, :], preferred_element_type=f32)

    # ALL D*TN messages through the pretrans in one MXU matmul; block-diagonal
    # weights keep the 4 packed nodes independent and make the output 128 lanes dense.
    e = jnp.dot(msg_ref[...], w_ref[OFF_MSG:OFF_DST, :],
                preferred_element_type=f32)              # (D*tnp, 128)

    # Reductions over the D message slots (static unroll, pure VALU: dir weights
    # arrive pre-broadcast/packed, row-aligned with e).
    e0 = e[0:tnp, :]
    acc_sum = e0
    acc_max = e0
    acc_dir = e0 * wn_ref[0:tnp, :]
    for d in range(1, D):
        ed = e[d * tnp:(d + 1) * tnp, :]
        acc_sum = acc_sum + ed
        acc_max = jnp.maximum(acc_max, ed)
        acc_dir = acc_dir + ed * wn_ref[d * tnp:(d + 1) * tnp, :]

    agg_mean = acc_sum * (1.0 / D) + hdst
    agg_max  = acc_max + hdst
    agg_dir  = acc_dir + wn_tot * hdst

    # posttrans: four accumulating K=128 block-diag matmuls (no in-kernel lane
    # concat); scale_amplification is folded into the mean/max/dir weight blocks.
    hp = jnp.dot(h_bf, w_ref[OFF_PH:OFF_PMEAN, :], preferred_element_type=f32)
    hp = hp + jnp.dot(agg_mean.astype(bf16), w_ref[OFF_PMEAN:OFF_PMAX, :],
                      preferred_element_type=f32)
    hp = hp + jnp.dot(agg_max.astype(bf16), w_ref[OFF_PMAX:OFF_PDIR, :],
                      preferred_element_type=f32)
    hp = hp + jnp.dot(agg_dir.astype(bf16), w_ref[OFF_PDIR:W_ROWS, :],
                      preferred_element_type=f32)

    hp = hp * post_scale + post_bias           # graph_norm + eval BatchNorm + biases
    hp = jnp.maximum(hp, 0.0)                  # ReLU (dropout p=0 -> identity)
    out_ref[...] = h + hp                      # residual; full-128-lane store


def dgn_forward_pallas(node_data, msg, wn_packed, w_slab):
    """Node-tile grid: TN nodes (TNP packed rows) per step, tiles 'parallel'."""
    return pl.pallas_call(
        dgn_kernel,
        out_shape=jax.ShapeDtypeStruct((NP, LANES), jnp.float32),
        grid=(NT,),
        in_specs=[
            pl.BlockSpec((4, TNP, LANES), lambda i: (0, i, 0)),        # per-node slab
            pl.BlockSpec((D * TNP, MSG_LANES), lambda i: (i, 0)),      # packed messages
            pl.BlockSpec((D * TNP, LANES), lambda i: (i, 0)),          # packed dir weights
            pl.BlockSpec((W_ROWS, LANES), lambda i: (0, 0)),           # weight slab
        ],
        out_specs=pl.BlockSpec((TNP, LANES), lambda i: (i, 0)),
        compiler_params=pltpu.CompilerParams(dimension_semantics=("parallel",)),
    )(node_data, msg, wn_packed, w_slab)


# ------------------------- wrapper-side packing / folding -------------------------
def pack_operands(h, ef, eig, snorm, src_idx, params):
    """Lay inputs out lane-dense (4 nodes per 128-lane row) and fold constants exactly."""
    f32 = jnp.float32
    F = IN_DIM
    w_pre, w_post = params["w_pre"], params["w_post"]
    b_pre, b_post = params["b_pre"], params["b_post"]

    # folded / transposed weight blocks (f32 math; bf16 slab for the MXU)
    w_src, w_dst, w_ef = w_pre[:, :F], w_pre[:, F:2 * F], w_pre[:, 2 * F:]
    wp_h    = w_post[:, 0:F].T
    wp_mean = (w_post[:, 1 * F:2 * F] + SCALE_AMP * w_post[:, 4 * F:5 * F]).T
    wp_max  = (w_post[:, 2 * F:3 * F] + SCALE_AMP * w_post[:, 5 * F:6 * F]).T
    wp_dir  = (w_post[:, 3 * F:4 * F] + SCALE_AMP * w_post[:, 6 * F:7 * F]).T
    w_edge  = jnp.concatenate(
        [w_src.T, w_ef.T, jnp.zeros((EDGE_K - F - EDGE_DIM, F), f32)], axis=0)  # (64,32)

    def bdiag4(w):            # (k,32) -> (4k,128) block-diag: packed nodes never mix
        k, f = w.shape
        out = jnp.zeros((G * k, G * f), w.dtype)
        for j in range(G):
            out = out.at[j * k:(j + 1) * k, j * f:(j + 1) * f].set(w)
        return out

    w_slab = jnp.concatenate(
        [bdiag4(w_edge), bdiag4(w_dst.T), bdiag4(wp_h),
         bdiag4(wp_mean), bdiag4(wp_max), bdiag4(wp_dir)],
        axis=0).astype(jnp.bfloat16)                                    # (896,128)

    # dir1-av weights, exact f32 (was in-kernel with approx reciprocal before)
    eig_s = eig[:, 1][src_idx]                                          # (N, D)
    eig_d = eig[:, 1:2]                                                 # (N, 1)
    wabs = jnp.abs(eig_s - eig_d)
    wsum = wabs.sum(axis=1, keepdims=True)
    wn = wabs / (wsum + EPS)                                            # (N, D)
    wn_tot = wn.sum(axis=1, keepdims=True)                              # (N, 1)

    # epilogue scale/bias: graph_norm * eval-BatchNorm, b_pre/b_post folded exactly
    bn_scale = params["bn_gamma"] / jnp.sqrt(params["bn_var"] + BN_EPS)  # (1,32)
    bn_bias = params["bn_beta"] - params["bn_mean"] * bn_scale
    post_scale = snorm * bn_scale                                        # (N,32)
    bias_lin = (b_post + b_pre @ wp_mean + b_pre @ wp_max
                + wn_tot * (b_pre @ wp_dir))                             # (N,32)
    post_bias = bias_lin * post_scale + bn_bias                          # (N,32)

    def pack32(x):            # (N,32) f32 -> (N/4,128): node 4r+j -> row r, lanes 32j..
        return x.astype(f32).reshape(NP, LANES)

    node_data = jnp.stack(
        [pack32(h),
         pack32(jnp.broadcast_to(wn_tot, (N, F))),
         pack32(post_scale),
         pack32(post_bias)], axis=0)                                     # (4, NP, 128)

    # per-edge operand [h_src | ef | pad], rows tile-major / slot-major / node-group
    # so each grid step reads one contiguous 2-D block.
    # TODO(synk): the neighbor gather h[src_idx] (DGL edge-src lookup) and this packing
    # run as XLA glue; an in-kernel variant would scalar-prefetch src_idx and DMA-gather.
    h_src = h[src_idx]                                                   # (N, D, 32)
    msg_node = jnp.concatenate(
        [h_src, ef, jnp.zeros((N, D, EDGE_K - F - EDGE_DIM), f32)], axis=-1)  # (N,D,64)
    msg = (msg_node.reshape(NT, TNP, G, D, EDGE_K)
                   .transpose(0, 3, 1, 2, 4)
                   .reshape(NT * D * TNP, MSG_LANES)).astype(jnp.bfloat16)

    wn_b = jnp.broadcast_to(wn[:, :, None], (N, D, F))
    wn_packed = (wn_b.reshape(NT, TNP, G, D, F)
                     .transpose(0, 3, 1, 2, 4)
                     .reshape(NT * D * TNP, LANES)).astype(f32)

    return node_data, msg, wn_packed, w_slab


# ------------------------------- pure-JAX reference -------------------------------
def reference_forward(h, ef, eig, snorm, src_idx, params):
    HI = jax.lax.Precision.HIGHEST          # exact f32 oracle
    hsrc = h[src_idx]                                            # (N, D, F)
    hdst = jnp.broadcast_to(h[:, None, :], hsrc.shape)
    z2 = jnp.concatenate([hsrc, hdst, ef], axis=-1)              # (N, D, 80)
    epre = jnp.dot(z2, params["w_pre"].T, precision=HI) + params["b_pre"]
    eig_s = eig[:, 1][src_idx]                                   # (N, D)
    eig_d = eig[:, 1:2]                                          # (N, 1)
    agg_mean = epre.mean(axis=1)
    agg_max = epre.max(axis=1)
    w = jnp.abs(eig_s - eig_d)
    wn = w / (w.sum(axis=1, keepdims=True) + EPS)
    agg_dir = (epre * wn[:, :, None]).sum(axis=1)
    h_agg = jnp.concatenate([agg_mean, agg_max, agg_dir], axis=1)
    h_agg = jnp.concatenate([h_agg, h_agg * SCALE_AMP], axis=1)
    hcat = jnp.concatenate([h, h_agg], axis=1)
    hp = jnp.dot(hcat, params["w_post"].T, precision=HI) + params["b_post"]
    hp = hp * snorm
    hp = ((hp - params["bn_mean"]) / jnp.sqrt(params["bn_var"] + BN_EPS)
          * params["bn_gamma"] + params["bn_beta"])
    hp = jnp.maximum(hp, 0.0)
    return h + hp


# ------------------------------------- params --------------------------------------
def make_params(key):
    ks = jax.random.split(key, 8)
    pre_in = 2 * IN_DIM + EDGE_DIM

    def xavier(k, shape):                                        # (out, in)
        a = math.sqrt(6.0 / (shape[0] + shape[1]))
        return jax.random.uniform(k, shape, jnp.float32, -a, a)

    return {
        "w_pre": xavier(ks[0], (IN_DIM, pre_in)),
        "w_post": xavier(ks[1], (OUT_DIM, POST_IN)),
        # FCLayer zeroes biases at init; small nonzero values here exercise the exact
        # wrapper-side bias folds (forward semantics support arbitrary biases).
        "b_pre": 0.05 * jax.random.normal(ks[2], (1, IN_DIM), jnp.float32),
        "b_post": 0.05 * jax.random.normal(ks[3], (1, OUT_DIM), jnp.float32),
        "bn_gamma": 1.0 + 0.1 * jax.random.uniform(ks[4], (1, OUT_DIM), jnp.float32),
        "bn_beta": 0.05 * jax.random.normal(ks[5], (1, OUT_DIM), jnp.float32),
        "bn_mean": 0.1 * jax.random.normal(ks[6], (1, OUT_DIM), jnp.float32),
        "bn_var": jax.random.uniform(ks[7], (1, OUT_DIM), jnp.float32, 0.5, 1.5),
    }


# ------------------------------------- main ---------------------------------------
if __name__ == "__main__":
    key = jax.random.PRNGKey(0)
    k_h, k_e, k_eig, k_sn, k_idx, k_p = jax.random.split(key, 6)

    h = jax.random.normal(k_h, (N, IN_DIM), jnp.float32)
    ef = jax.random.normal(k_e, (N, D, EDGE_DIM), jnp.float32)        # edge feats, dst-major
    eig = jax.random.normal(k_eig, (N, EIG_DIM), jnp.float32)
    snorm = jax.random.uniform(k_sn, (N, 1), jnp.float32, 0.5, 1.5)
    src_idx = jax.random.randint(k_idx, (N, D), 0, N, jnp.int32)      # regular in-degree D

    params = make_params(k_p)
    node_data, msg, wn_packed, w_slab = pack_operands(h, ef, eig, snorm, src_idx, params)

    out_packed = dgn_forward_pallas(node_data, msg, wn_packed, w_slab)
    out_packed = jax.block_until_ready(out_packed)
    out = np.asarray(out_packed).reshape(N, OUT_DIM)                  # unpack 4 nodes / row

    ref = jax.block_until_ready(reference_forward(h, ef, eig, snorm, src_idx, params))
    # Kernel matmuls use bf16 operands with f32 accumulation; reference is exact f32
    # (HIGHEST precision), so the tolerance covers bf16 operand rounding only.
    np.testing.assert_allclose(out, np.asarray(ref), rtol=2e-2, atol=5e-2)

    print("KERNEL_OK")
</pallas_src>

<mosaic_0001>
module attributes {stable_mosaic.version = 11 : i64} {
  func.func @dgn_kernel(%arg0: i32, %arg1: memref<4x64x128xf32, #tpu.memory_space<vmem>>, %arg2: memref<512x256xbf16, #tpu.memory_space<vmem>>, %arg3: memref<512x128xf32, #tpu.memory_space<vmem>>, %arg4: memref<896x128xbf16, #tpu.memory_space<vmem>>, %arg5: memref<64x128xf32, #tpu.memory_space<vmem>>) attributes {dimension_semantics = [#tpu.dimension_semantics<parallel>], iteration_bounds = array<i64: 2>, scalar_prefetch = 0 : i64, scratch_operands = 0 : i64, tpu.core_type = #tpu.core_type<tc>, window_params = [{transform_indices = @transform_0, window_bounds = array<i64: 4, 64, 128>}, {transform_indices = @transform_1, window_bounds = array<i64: 512, 256>}, {transform_indices = @transform_2, window_bounds = array<i64: 512, 128>}, {pipeline_mode = #tpu.pipeline_mode<synchronous>, transform_indices = @transform_3, window_bounds = array<i64: 896, 128>}, {transform_indices = @transform_4, window_bounds = array<i64: 64, 128>}]} {
    %c0 = arith.constant 0 : index
    %c0_0 = arith.constant 0 : index
    %c0_1 = arith.constant 0 : index
    %0 = vector.load %arg1[%c0, %c0_0, %c0_1] : memref<4x64x128xf32, #tpu.memory_space<vmem>>, vector<1x64x128xf32>
    %1 = vector.shape_cast %0 : vector<1x64x128xf32> to vector<64x128xf32>
    %c1 = arith.constant 1 : index
    %c0_2 = arith.constant 0 : index
    %c0_3 = arith.constant 0 : index
    %2 = vector.load %arg1[%c1, %c0_2, %c0_3] : memref<4x64x128xf32, #tpu.memory_space<vmem>>, vector<1x64x128xf32>
    %3 = vector.shape_cast %2 : vector<1x64x128xf32> to vector<64x128xf32>
    %c2 = arith.constant 2 : index
    %c0_4 = arith.constant 0 : index
    %c0_5 = arith.constant 0 : index
    %4 = vector.load %arg1[%c2, %c0_4, %c0_5] : memref<4x64x128xf32, #tpu.memory_space<vmem>>, vector<1x64x128xf32>
    %5 = vector.shape_cast %4 : vector<1x64x128xf32> to vector<64x128xf32>
    %c3 = arith.constant 3 : index
    %c0_6 = arith.constant 0 : index
    %c0_7 = arith.constant 0 : index
    %6 = vector.load %arg1[%c3, %c0_6, %c0_7] : memref<4x64x128xf32, #tpu.memory_space<vmem>>, vector<1x64x128xf32>
    %7 = vector.shape_cast %6 : vector<1x64x128xf32> to vector<64x128xf32>
    %8 = arith.truncf %1 : vector<64x128xf32> to vector<64x128xbf16>
    %c256 = arith.constant 256 : index
    %c0_8 = arith.constant 0 : index
    %9 = vector.load %arg4[%c256, %c0_8] : memref<896x128xbf16, #tpu.memory_space<vmem>>, vector<128x128xbf16>
    %cst = arith.constant dense<0.000000e+00> : vector<64x128xf32>
    %10 = tpu.matmul %8, %9, %cst {dimension_numbers = #tpu.dot_dimension_numbers<[1], [0], [0], [1], [0, 0, 1, 1], [], []>} : vector<64x128xbf16>, vector<128x128xbf16>, vector<64x128xf32> -> vector<64x128xf32>
    %c0_9 = arith.constant 0 : index
    %c0_10 = arith.constant 0 : index
    %11 = vector.load %arg2[%c0_9, %c0_10] : memref<512x256xbf16, #tpu.memory_space<vmem>>, vector<512x256xbf16>
    %c0_11 = arith.constant 0 : index
    %c0_12 = arith.constant 0 : index
    %12 = vector.load %arg4[%c0_11, %c0_12] : memref<896x128xbf16, #tpu.memory_space<vmem>>, vector<256x128xbf16>
    %cst_13 = arith.constant dense<0.000000e+00> : vector<512x128xf32>
    %13 = tpu.matmul %11, %12, %cst_13 {dimension_numbers = #tpu.dot_dimension_numbers<[1], [0], [0], [1], [0, 0, 1, 1], [], []>} : vector<512x256xbf16>, vector<256x128xbf16>, vector<512x128xf32> -> vector<512x128xf32>
    %14 = vector.extract_strided_slice %13 {offsets = [0, 0], sizes = [64, 128], strides = [1, 1]} : vector<512x128xf32> to vector<64x128xf32>
    %c0_14 = arith.constant 0 : index
    %c0_15 = arith.constant 0 : index
    %15 = vector.load %arg3[%c0_14, %c0_15] : memref<512x128xf32, #tpu.memory_space<vmem>>, vector<64x128xf32>
    %16 = arith.mulf %14, %15 : vector<64x128xf32>
    %17 = vector.extract_strided_slice %13 {offsets = [64, 0], sizes = [64, 128], strides = [1, 1]} : vector<512x128xf32> to vector<64x128xf32>
    %18 = arith.addf %14, %17 : vector<64x128xf32>
    %19 = arith.maximumf %14, %17 : vector<64x128xf32>
    %c64 = arith.constant 64 : index
    %c0_16 = arith.constant 0 : index
    %20 = vector.load %arg3[%c64, %c0_16] : memref<512x128xf32, #tpu.memory_space<vmem>>, vector<64x128xf32>
    %21 = arith.mulf %17, %20 : vector<64x128xf32>
    %22 = arith.addf %16, %21 : vector<64x128xf32>
    %23 = vector.extract_strided_slice %13 {offsets = [128, 0], sizes = [64, 128], strides = [1, 1]} : vector<512x128xf32> to vector<64x128xf32>
    %24 = arith.addf %18, %23 : vector<64x128xf32>
    %25 = arith.maximumf %19, %23 : vector<64x128xf32>
    %c128 = arith.constant 128 : index
    %c0_17 = arith.constant 0 : index
    %26 = vector.load %arg3[%c128, %c0_17] : memref<512x128xf32, #tpu.memory_space<vmem>>, vector<64x128xf32>
    %27 = arith.mulf %23, %26 : vector<64x128xf32>
    %28 = arith.addf %22, %27 : vector<64x128xf32>
    %29 = vector.extract_strided_slice %13 {offsets = [192, 0], sizes = [64, 128], strides = [1, 1]} : vector<512x128xf32> to vector<64x128xf32>
    %30 = arith.addf %24, %29 : vector<64x128xf32>
    %31 = arith.maximumf %25, %29 : vector<64x128xf32>
    %c192 = arith.constant 192 : index
    %c0_18 = arith.constant 0 : index
    %32 = vector.load %arg3[%c192, %c0_18] : memref<512x128xf32, #tpu.memory_space<vmem>>, vector<64x128xf32>
    %33 = arith.mulf %29, %32 : vector<64x128xf32>
    %34 = arith.addf %28, %33 : vector<64x128xf32>
    %35 = vector.extract_strided_slice %13 {offsets = [256, 0], sizes = [64, 128], strides = [1, 1]} : vector<512x128xf32> to vector<64x128xf32>
    %36 = arith.addf %30, %35 : vector<64x128xf32>
    %37 = arith.maximumf %31, %35 : vector<64x128xf32>
    %c256_19 = arith.constant 256 : index
    %c0_20 = arith.constant 0 : index
    %38 = vector.load %arg3[%c256_19, %c0_20] : memref<512x128xf32, #tpu.memory_space<vmem>>, vector<64x128xf32>
    %39 = arith.mulf %35, %38 : vector<64x128xf32>
    %40 = arith.addf %34, %39 : vector<64x128xf32>
    %41 = vector.extract_strided_slice %13 {offsets = [320, 0], sizes = [64, 128], strides = [1, 1]} : vector<512x128xf32> to vector<64x128xf32>
    %42 = arith.addf %36, %41 : vector<64x128xf32>
    %43 = arith.maximumf %37, %41 : vector<64x128xf32>
    %c320 = arith.constant 320 : index
    %c0_21 = arith.constant 0 : index
    %44 = vector.load %arg3[%c320, %c0_21] : memref<512x128xf32, #tpu.memory_space<vmem>>, vector<64x128xf32>
    %45 = arith.mulf %41, %44 : vector<64x128xf32>
    %46 = arith.addf %40, %45 : vector<64x128xf32>
    %47 = vector.extract_strided_slice %13 {offsets = [384, 0], sizes = [64, 128], strides = [1, 1]} : vector<512x128xf32> to vector<64x128xf32>
    %48 = arith.addf %42, %47 : vector<64x128xf32>
    %49 = arith.maximumf %43, %47 : vector<64x128xf32>
    %c384 = arith.constant 384 : index
    %c0_22 = arith.constant 0 : index
    %50 = vector.load %arg3[%c384, %c0_22] : memref<512x128xf32, #tpu.memory_space<vmem>>, vector<64x128xf32>
    %51 = arith.mulf %47, %50 : vector<64x128xf32>
    %52 = arith.addf %46, %51 : vector<64x128xf32>
    %53 = vector.extract_strided_slice %13 {offsets = [448, 0], sizes = [64, 128], strides = [1, 1]} : vector<512x128xf32> to vector<64x128xf32>
    %54 = arith.addf %48, %53 : vector<64x128xf32>
    %55 = arith.maximumf %49, %53 : vector<64x128xf32>
    %c448 = arith.constant 448 : index
    %c0_23 = arith.constant 0 : index
    %56 = vector.load %arg3[%c448, %c0_23] : memref<512x128xf32, #tpu.memory_space<vmem>>, vector<64x128xf32>
    %57 = arith.mulf %53, %56 : vector<64x128xf32>
    %58 = arith.addf %52, %57 : vector<64x128xf32>
    %cst_24 = arith.constant 1.250000e-01 : f32
    %59 = vector.broadcast %cst_24 : f32 to vector<64x128xf32>
    %60 = arith.mulf %54, %59 : vector<64x128xf32>
    %61 = arith.addf %60, %10 : vector<64x128xf32>
    %62 = arith.addf %55, %10 : vector<64x128xf32>
    %63 = arith.mulf %3, %10 : vector<64x128xf32>
    %64 = arith.addf %58, %63 : vector<64x128xf32>
    %c384_25 = arith.constant 384 : index
    %c0_26 = arith.constant 0 : index
    %65 = vector.load %arg4[%c384_25, %c0_26] : memref<896x128xbf16, #tpu.memory_space<vmem>>, vector<128x128xbf16>
    %cst_27 = arith.constant dense<0.000000e+00> : vector<64x128xf32>
    %66 = tpu.matmul %8, %65, %cst_27 {dimension_numbers = #tpu.dot_dimension_numbers<[1], [0], [0], [1], [0, 0, 1, 1], [], []>} : vector<64x128xbf16>, vector<128x128xbf16>, vector<64x128xf32> -> vector<64x128xf32>
    %67 = arith.truncf %61 : vector<64x128xf32> to vector<64x128xbf16>
    %c512 = arith.constant 512 : index
    %c0_28 = arith.constant 0 : index
    %68 = vector.load %arg4[%c512, %c0_28] : memref<896x128xbf16, #tpu.memory_space<vmem>>, vector<128x128xbf16>
    %cst_29 = arith.constant dense<0.000000e+00> : vector<64x128xf32>
    %69 = tpu.matmul %67, %68, %cst_29 {dimension_numbers = #tpu.dot_dimension_numbers<[1], [0], [0], [1], [0, 0, 1, 1], [], []>} : vector<64x128xbf16>, vector<128x128xbf16>, vector<64x128xf32> -> vector<64x128xf32>
    %70 = arith.addf %66, %69 : vector<64x128xf32>
    %71 = arith.truncf %62 : vector<64x128xf32> to vector<64x128xbf16>
    %c640 = arith.constant 640 : index
    %c0_30 = arith.constant 0 : index
    %72 = vector.load %arg4[%c640, %c0_30] : memref<896x128xbf16, #tpu.memory_space<vmem>>, vector<128x128xbf16>
    %cst_31 = arith.constant dense<0.000000e+00> : vector<64x128xf32>
    %73 = tpu.matmul %71, %72, %cst_31 {dimension_numbers = #tpu.dot_dimension_numbers<[1], [0], [0], [1], [0, 0, 1, 1], [], []>} : vector<64x128xbf16>, vector<128x128xbf16>, vector<64x128xf32> -> vector<64x128xf32>
    %74 = arith.addf %70, %73 : vector<64x128xf32>
    %75 = arith.truncf %64 : vector<64x128xf32> to vector<64x128xbf16>
    %c768 = arith.constant 768 : index
    %c0_32 = arith.constant 0 : index
    %76 = vector.load %arg4[%c768, %c0_32] : memref<896x128xbf16, #tpu.memory_space<vmem>>, vector<128x128xbf16>
    %cst_33 = arith.constant dense<0.000000e+00> : vector<64x128xf32>
    %77 = tpu.matmul %75, %76, %cst_33 {dimension_numbers = #tpu.dot_dimension_numbers<[1], [0], [0], [1], [0, 0, 1, 1], [], []>} : vector<64x128xbf16>, vector<128x128xbf16>, vector<64x128xf32> -> vector<64x128xf32>
    %78 = arith.addf %74, %77 : vector<64x128xf32>
    %79 = arith.mulf %78, %5 : vector<64x128xf32>
    %80 = arith.addf %79, %7 : vector<64x128xf32>
    %cst_34 = arith.constant 0.000000e+00 : f32
    %81 = vector.broadcast %cst_34 : f32 to vector<64x128xf32>
    %82 = arith.maximumf %80, %81 : vector<64x128xf32>
    %83 = arith.addf %1, %82 : vector<64x128xf32>
    %c0_35 = arith.constant 0 : index
    %c0_36 = arith.constant 0 : index
    %84 = vector.load %arg5[%c0_35, %c0_36] : memref<64x128xf32, #tpu.memory_space<vmem>>, vector<64x128xf32>
    tpu.vector_store %arg5[%c0_35, %c0_36], %83 {strides = array<i32>} : memref<64x128xf32, #tpu.memory_space<vmem>>, vector<64x128xf32>,
    return
  }
  func.func @transform_0(%arg0: i32) -> (i32, i32, i32) {
    %c0_i32 = arith.constant 0 : i32
    %c0_i32_0 = arith.constant 0 : i32
    %c0_i32_1 = arith.constant 0 : i32
    return %c0_i32, %arg0, %c0_i32_0 : i32, i32, i32
  }
  func.func @transform_1(%arg0: i32) -> (i32, i32) {
    %c0_i32 = arith.constant 0 : i32
    %c0_i32_0 = arith.constant 0 : i32
    return %arg0, %c0_i32 : i32, i32
  }
  func.func @transform_2(%arg0: i32) -> (i32, i32) {
    %c0_i32 = arith.constant 0 : i32
    %c0_i32_0 = arith.constant 0 : i32
    return %arg0, %c0_i32 : i32, i32
  }
  func.func @transform_3(%arg0: i32) -> (i32, i32) {
    %c0_i32 = arith.constant 0 : i32
    %c0_i32_0 = arith.constant 0 : i32
    %c0_i32_1 = arith.constant 0 : i32
    return %c0_i32, %c0_i32_0 : i32, i32
  }
  func.func @transform_4(%arg0: i32) -> (i32, i32) {
    %c0_i32 = arith.constant 0 : i32
    %c0_i32_0 = arith.constant 0 : i32
    return %arg0, %c0_i32 : i32, i32
  }
}

</mosaic_0001>

<llo_original>
// kernel: tpu_custom_call.1
$region0: #{tpu_custom_call.1}
  #allocation0 [shape = 'u32[]', space=smem, size = 0x4, offset = 0x4, fixed_abs, tag = 'smem constant byte address 0x4 - core index']
  #allocation1 [shape = 'u32[144,128]{1,0:T(1,128)}', space=vmem, size = 0x12000, scoped, tag = 'internal scratch']
  #allocation11 [shape = 's32[]', space=sflag, size = 0x4, offset = 0, fixed_abs, tag = 'sflag constant byte address 0x0 - dummy sync flag']
  %s0 = inlined_call_operand.hbm [shape: f32[4,128,128], index: 0, kind: input, shape index: {}]
  %s1 = inlined_call_operand.hbm [shape: bf16[1024,256], index: 1, kind: input, shape index: {}]
  %s2 = inlined_call_operand.hbm [shape: f32[1024,128], index: 2, kind: input, shape index: {}]
  %s3 = inlined_call_operand.hbm [shape: bf16[896,128], index: 3, kind: input, shape index: {}]
  %s4 = inlined_call_operand.hbm [shape: f32[128,128], index: 4, kind: output, shape index: {}]
  %s5 = sld [smem:[#allocation0]]
  $region65: #{tpu_custom_call.1} parent=0
    _
  %s7 = ssub.s32 1, %s5
  %s8 = scalar_select 0, %s7, %s5
  $region1: #{tpu_custom_call.1} parent=0
    #allocation2 [shape = 'u8[262144]{0}', space=vmem, size = 0x40000, scoped, tag = 'input window, operand 0']
    #allocation3 [shape = 's32[2]{0}', space=sflag, size = 0x8, scoped, tag = 'scoped memory for tpu_custom_call.1']
    #allocation4 [shape = 's32[2]{0}', space=sflag, size = 0x8, scoped, tag = 'scoped memory for tpu_custom_call.1']
    #allocation5 [shape = 'u8[524288]{0}', space=vmem, size = 0x80000, scoped, tag = 'input window, operand 1']
    #allocation6 [shape = 's32[2]{0}', space=sflag, size = 0x8, scoped, tag = 'scoped memory for tpu_custom_call.1']
    #allocation7 [shape = 'u8[524288]{0}', space=vmem, size = 0x80000, scoped, tag = 'input window, operand 2']
    #allocation8 [shape = 'u8[229376]{0}', space=vmem, size = 0x38000, scoped, tag = 'input window, operand 3, single buffered']
    #allocation9 [shape = 's32[1]{0}', space=sflag, size = 0x4, scoped, tag = 'scoped memory for tpu_custom_call.1']
    #allocation10 [shape = 'u8[65536]{0}', space=vmem, size = 0x10000, scoped, tag = 'output window, operand 0']
    %9 = vsyncpa [#allocation3], 0
    %s10 = scalar_lea.sflag [#allocation3], 1
    %11 = vsyncpa %s10, 0
    %12 = vsyncpa [#allocation6], 0
    %s13 = scalar_lea.sflag [#allocation6], 1
    %14 = vsyncpa %s13, 0
    %15 = vsyncpa [#allocation9], 0
    %16 = vsyncpa [#allocation4], 0
    %s17 = scalar_lea.sflag [#allocation4], 1
    %18 = vsyncpa %s17, 0
    loop: start=0, step=1, limit=4
    $region2: #{tpu_custom_call.1} parent=1 // loop_pre_header
      _
    $region3: #{tpu_custom_call.1} parent=1 // loop_header
      %s20 = sphi 0, %s24
      %p21 = scmp.ge.s32.totalorder %s20, 4
      %s30 = sphi 0, %s32
      %s33 = sphi 0, %s30
      %s34 = sphi 0, %s33
      %s50 = sphi 0, %s34
      %s56 = sphi 0, %s58
      %s59 = sphi 0, %s56
      %s60 = sphi 0, %s59
      %s76 = sphi 0, %s60
      %s82 = sphi 0, %s84
      %s85 = sphi 0, %s82
      %s86 = sphi 0, %s85
      %s102 = sphi 0, %s86
      %s106 = sphi 0, %s106
      %s108 = sphi 0, %s106
      %s109 = sphi 0, %s108
      %s123 = sphi 0, %s109
      %s129 = sphi 0, %s131
      %s132 = sphi 0, %s129
      %s133 = sphi 0, %s132
      %s149 = sphi 0, %s133
    $region4: #{tpu_custom_call.1} parent=1 // loop_header_branch
      %23 = sbr.rel (%p21) target = $region8
    $region5: #{tpu_custom_call.1} parent=1 // loop_body
      %s25 = ssub.s32 %s20, 1
      %s26 = ssub.s32 %s20, 2
      %s27 = sadd.s32 %s20, 1
      %s28 = ssub.s32 %s20, %s27
      %p29 = scmp.eq.s32.totalorder %s28, 0
      %s31 = sadd.s32 %s30, 1
      %s32 = scalar_select %p29, %s30, %s31
      %p35 = pneg %p29
      %p36 = scmp.eq.s32.totalorder %s20, 1
      %p37 = por %p35, %p36
      %p38 = scmp.ne.s32.totalorder %s30, %s33
      %p39 = scmp.eq.s32.totalorder %s20, 0
      %p40 = por %p38, %p39
      %p41 = scmp.ne.s32.totalorder %s30, %s33
      %p42 = scmp.eq.s32.totalorder %s25, 1
      %p43 = por %p41, %p42
      %p44 = scmp.ne.s32.totalorder %s33, %s34
      %p45 = scmp.eq.s32.totalorder %s25, 0
      %p46 = por %p44, %p45
      %p47 = scmp.ne.s32.totalorder %s33, %s34
      %p48 = scmp.eq.s32.totalorder %s26, 1
      %p49 = por %p47, %p48
      %p51 = scmp.ne.s32.totalorder %s34, %s50
      %p52 = scmp.eq.s32.totalorder %s26, 0
      %p53 = por %p51, %p52
      %s54 = ssub.s32 %s20, %s27
      %p55 = scmp.eq.s32.totalorder %s54, 0
      %s57 = sadd.s32 %s56, 1
      %s58 = scalar_select %p55, %s56, %s57
      %p61 = pneg %p55
      %p62 = scmp.eq.s32.totalorder %s20, 1
      %p63 = por %p61, %p62
      %p64 = scmp.ne.s32.totalorder %s56, %s59
      %p65 = scmp.eq.s32.totalorder %s20, 0
      %p66 = por %p64, %p65
      %p67 = scmp.ne.s32.totalorder %s56, %s59
      %p68 = scmp.eq.s32.totalorder %s25, 1
      %p69 = por %p67, %p68
      %p70 = scmp.ne.s32.totalorder %s59, %s60
      %p71 = scmp.eq.s32.totalorder %s25, 0
      %p72 = por %p70, %p71
      %p73 = scmp.ne.s32.totalorder %s59, %s60
      %p74 = scmp.eq.s32.totalorder %s26, 1
      %p75 = por %p73, %p74
      %p77 = scmp.ne.s32.totalorder %s60, %s76
      %p78 = scmp.eq.s32.totalorder %s26, 0
      %p79 = por %p77, %p78
      %s80 = ssub.s32 %s20, %s27
      %p81 = scmp.eq.s32.totalorder %s80, 0
      %s83 = sadd.s32 %s82, 1
      %s84 = scalar_select %p81, %s82, %s83
      %p87 = pneg %p81
      %p88 = scmp.eq.s32.totalorder %s20, 1
      %p89 = por %p87, %p88
      %p90 = scmp.ne.s32.totalorder %s82, %s85
      %p91 = scmp.eq.s32.totalorder %s20, 0
      %p92 = por %p90, %p91
      %p93 = scmp.ne.s32.totalorder %s82, %s85
      %p94 = scmp.eq.s32.totalorder %s25, 1
      %p95 = por %p93, %p94
      %p96 = scmp.ne.s32.totalorder %s85, %s86
      %p97 = scmp.eq.s32.totalorder %s25, 0
      %p98 = por %p96, %p97
      %p99 = scmp.ne.s32.totalorder %s85, %s86
      %p100 = scmp.eq.s32.totalorder %s26, 1
      %p101 = por %p99, %p100
      %p103 = scmp.ne.s32.totalorder %s86, %s102
      %p104 = scmp.eq.s32.totalorder %s26, 0
      %p105 = por %p103, %p104
      %s107 = sadd.s32 %s106, 1
      %p110 = scmp.eq.s32.totalorder %s20, 1
      %p111 = scmp.ne.s32.totalorder %s106, %s108
      %p112 = scmp.eq.s32.totalorder %s20, 0
      %p113 = por %p111, %p112
      %p114 = scmp.ne.s32.totalorder %s106, %s108
      %p115 = scmp.eq.s32.totalorder %s25, 1
      %p116 = por %p114, %p115
      %p117 = scmp.ne.s32.totalorder %s108, %s109
      %p118 = scmp.eq.s32.totalorder %s25, 0
      %p119 = por %p117, %p118
      %p120 = scmp.ne.s32.totalorder %s108, %s109
      %p121 = scmp.eq.s32.totalorder %s26, 1
      %p122 = por %p120, %p121
      %p124 = scmp.ne.s32.totalorder %s109, %s123
      %p125 = scmp.eq.s32.totalorder %s26, 0
      %p126 = por %p124, %p125
      %s127 = ssub.s32 %s20, %s27
      %p128 = scmp.eq.s32.totalorder %s127, 0
      %s130 = sadd.s32 %s129, 1
      %s131 = scalar_select %p128, %s129, %s130
      %p134 = pneg %p128
      %p135 = scmp.eq.s32.totalorder %s20, 1
      %p136 = por %p134, %p135
      %p137 = scmp.ne.s32.totalorder %s129, %s132
      %p138 = scmp.eq.s32.totalorder %s20, 0
      %p139 = por %p137, %p138
      %p140 = scmp.ne.s32.totalorder %s129, %s132
      %p141 = scmp.eq.s32.totalorder %s25, 1
      %p142 = por %p140, %p141
      %p143 = scmp.ne.s32.totalorder %s132, %s133
      %p144 = scmp.eq.s32.totalorder %s25, 0
      %p145 = por %p143, %p144
      %p146 = scmp.ne.s32.totalorder %s132, %s133
      %p147 = scmp.eq.s32.totalorder %s26, 1
      %p148 = por %p146, %p147
      %p150 = scmp.ne.s32.totalorder %s133, %s149
      %p151 = scmp.eq.s32.totalorder %s26, 0
      %p152 = por %p150, %p151
      %p153 = scmp.le.s32.totalorder 1, %s20
      %p154 = scmp.lt.s32.totalorder %s20, 3
      %p155 = pnand %p153, %p154
      %p156 = pneg %p155
      // Predicated region
      $region9: #{tpu_custom_call.1} parent=5 // pred_check
        _
      $region10: #{tpu_custom_call.1} parent=5 // pred_check_branch
        %158 = sbr.rel (%p155) target = $region12
      $region11: #{tpu_custom_call.1} parent=5 // pred_region
        %s159 = ssub.s32 %s20, 1
        // Predicated region
        $region13: #{tpu_custom_call.1} parent=11 // pred_check
          %p160 = pneg %p119
        $region14: #{tpu_custom_call.1} parent=11 // pred_check_branch
          %162 = sbr.rel (%p160) target = $region16
        $region15: #{tpu_custom_call.1} parent=11 // pred_region
          %s164 = ssub.s32 7168, 7168
          %165 = vsyncadd [#allocation9], %s164
          %s166 = sshll.u32 [#allocation8], 4
          %s167 = int_to_ptr.vmem [resolvable:$true] %s166
          %172 = dma.hbm_to_vmem [thread:$0]  %s3, 7168, %s167, [#allocation9], 64, 64, 4
        $region16: #{tpu_custom_call.1} parent=11 // pred_fallthru
          _
      $region12: #{tpu_custom_call.1} parent=5 // pred_fallthru
        _
      %p173 = scmp.lt.s32.totalorder %s20, 2
      // Predicated region
      $region17: #{tpu_custom_call.1} parent=5 // pred_check
        %p174 = pneg %p173
      $region18: #{tpu_custom_call.1} parent=5 // pred_check_branch
        %176 = sbr.rel (%p174) target = $region20
      $region19: #{tpu_custom_call.1} parent=5 // pred_region
        // Predicated region
        $region21: #{tpu_custom_call.1} parent=19 // pred_check
          %p177 = pneg %p40
        $region22: #{tpu_custom_call.1} parent=19 // pred_check_branch
          %179 = sbr.rel (%p177) target = $region24
        $region23: #{tpu_custom_call.1} parent=19 // pred_region
          #allocation12 [shape = 'u32[6]{0}', space=smem, size = 0x18, scoped, tag = 'DMA stride descriptor']
          %s180 = sand.u32 %s30, 1
          %s181 = scalar_lea.sflag [#allocation3], %s180
          %s182 = sand.u32 %s30, 1
          %s183 = smul.addr %s182, 256
          %s184 = scalar_lea.vmem [#allocation2], %s183
          %s185 = smul.u32 8, %s20
          %s187 = ssub.s32 4096, 4096
          %188 = vsyncadd %s181, %s187
          %s189 = smul.addr %s185, 128
          %s190 = scalar_lea.hbm %s0, %s189
          %s192 = sshll.u32 1, 14
          %s193 = sxor.u32 4294967295, %s192
          %s195 = sld [smem:[#allocation0]]
          %s196 = sadd.s32 2, %s195
          %s198 = sshll.u32 7, 26
          %s199 = sxor.u32 4294967295, %s198
          %s200 = sand.u32 0, %s199
          %s201 = sshll.u32 %s196, 26
          %s202 = sor.u32 %s200, %s201
          %s203 = sshll.u32 %s184, 4
          %s204 = int_to_ptr.vmem [resolvable:$true] %s203
          %210 = sst [smem:[#allocation12]] 2048
          %s211 = scalar_lea.smem [#allocation12], 1
          %212 = sst [smem:[%s211]] 1024
          %s213 = scalar_lea.smem [#allocation12], 2
          %214 = sst [smem:[%s213]] 8
          %s215 = scalar_lea.smem [#allocation12], 3
          %216 = sst [smem:[%s215]] 128
          %s217 = scalar_lea.smem [#allocation12], 4
          %218 = sst [smem:[%s217]] 128
          %s219 = scalar_lea.smem [#allocation12], 5
          %220 = sst [smem:[%s219]] 8
          %222 = dma.general %s190, 4096, %s204, %s181, [#allocation11], [#allocation12], %s202, 0
        $region24: #{tpu_custom_call.1} parent=19 // pred_fallthru
          _
        // Predicated region
        $region25: #{tpu_custom_call.1} parent=19 // pred_check
          %p223 = pneg %p66
        $region26: #{tpu_custom_call.1} parent=19 // pred_check_branch
          %225 = sbr.rel (%p223) target = $region28
        $region27: #{tpu_custom_call.1} parent=19 // pred_region
          %s226 = sand.u32 %s20, 1
          %s227 = scalar_lea.sflag [#allocation6], %s226
          %s228 = sand.u32 %s56, 1
          %s229 = smul.addr %s228, 512
          %s230 = scalar_lea.vmem [#allocation5], %s229
          %s231 = smul.u32 64, %s20
          %s233 = ssub.s32 8192, 8192
          %234 = vsyncadd %s227, %s233
          %s235 = smul.addr %s231, 2
          %s236 = smul.addr %s235, 64
          %s237 = scalar_lea.hbm %s1, %s236
          %s238 = sshll.u32 %s230, 4
          %s239 = int_to_ptr.vmem [resolvable:$true] %s238
          %244 = dma.hbm_to_vmem [thread:$0]  %s237, 8192, %s239, %s227, 128, 128, 8
        $region28: #{tpu_custom_call.1} parent=19 // pred_fallthru
          _
        // Predicated region
        $region29: #{tpu_custom_call.1} parent=19 // pred_check
          %p245 = pneg %p92
        $region30: #{tpu_custom_call.1} parent=19 // pred_check_branch
          %247 = sbr.rel (%p245) target = $region32
        $region31: #{tpu_custom_call.1} parent=19 // pred_region
          %s248 = sand.u32 %s20, 1
          %s249 = scalar_lea.sflag [#allocation6], %s248
          %s250 = sand.u32 %s82, 1
          %s251 = smul.addr %s250, 512
          %s252 = scalar_lea.vmem [#allocation7], %s251
          %s253 = smul.u32 64, %s20
          %s255 = ssub.s32 8192, 8192
          %256 = vsyncadd %s249, %s255
          %s257 = smul.addr %s253, 128
          %s258 = scalar_lea.hbm %s2, %s257
          %s259 = sshll.u32 %s252, 4
          %s260 = int_to_ptr.vmem [resolvable:$true] %s259
          %265 = dma.hbm_to_vmem [thread:$0]  %s258, 8192, %s260, %s249, 128, 128, 8
        $region32: #{tpu_custom_call.1} parent=19 // pred_fallthru
          _
      $region20: #{tpu_custom_call.1} parent=5 // pred_fallthru
        _
      %p266 = scmp.le.s32.totalorder 1, %s20
      %p267 = scmp.lt.s32.totalorder %s20, 3
      %p268 = pnand %p266, %p267
      %p269 = pneg %p268
      // Predicated region
      $region33: #{tpu_custom_call.1} parent=5 // pred_check
        _
      $region34: #{tpu_custom_call.1} parent=5 // pred_check_branch
        %271 = sbr.rel (%p268) target = $region36
      $region35: #{tpu_custom_call.1} parent=5 // pred_region
        %s272 = ssub.s32 %s20, 1
        %s273 = sand.u32 %s33, 1
        %s274 = scalar_lea.sflag [#allocation3], %s273
        %s275 = sand.u32 %s33, 1
        %s276 = smul.addr %s275, 256
        %s277 = scalar_lea.vmem [#allocation2], %s276
        // Predicated region
        $region37: #{tpu_custom_call.1} parent=35 // pred_check
          %p278 = pneg %p46
        $region38: #{tpu_custom_call.1} parent=35 // pred_check_branch
          %280 = sbr.rel (%p278) target = $region40
        $region39: #{tpu_custom_call.1} parent=35 // pred_region
          %281 = dma.done %s274, 4096
        $region40: #{tpu_custom_call.1} parent=35 // pred_fallthru
          _
        %s282 = sand.u32 %s25, 1
        %s283 = scalar_lea.sflag [#allocation6], %s282
        %s284 = sand.u32 %s59, 1
        %s285 = smul.addr %s284, 512
        %s286 = scalar_lea.vmem [#allocation5], %s285
        // Predicated region
        $region41: #{tpu_custom_call.1} parent=35 // pred_check
          %p287 = pneg %p72
        $region42: #{tpu_custom_call.1} parent=35 // pred_check_branch
          %289 = sbr.rel (%p287) target = $region44
        $region43: #{tpu_custom_call.1} parent=35 // pred_region
          %290 = dma.done %s283, 8192
        $region44: #{tpu_custom_call.1} parent=35 // pred_fallthru
          _
        %s291 = sand.u32 %s25, 1
        %s292 = scalar_lea.sflag [#allocation6], %s291
        %s293 = sand.u32 %s85, 1
        %s294 = smul.addr %s293, 512
        %s295 = scalar_lea.vmem [#allocation7], %s294
        // Predicated region
        $region45: #{tpu_custom_call.1} parent=35 // pred_check
          %p296 = pneg %p98
        $region46: #{tpu_custom_call.1} parent=35 // pred_check_branch
          %298 = sbr.rel (%p296) target = $region48
        $region47: #{tpu_custom_call.1} parent=35 // pred_region
          %299 = dma.done %s292, 8192
        $region48: #{tpu_custom_call.1} parent=35 // pred_fallthru
          _
        // Predicated region
        $region49: #{tpu_custom_call.1} parent=35 // pred_check
          %p300 = pneg %p119
        $region50: #{tpu_custom_call.1} parent=35 // pred_check_branch
          %302 = sbr.rel (%p300) target = $region52
        $region51: #{tpu_custom_call.1} parent=35 // pred_region
          %303 = dma.done [#allocation9], 7168
        $region52: #{tpu_custom_call.1} parent=35 // pred_fallthru
          _
        %s304 = sand.u32 %s33, 1
        %s305 = scalar_lea.sflag [#allocation3], %s304
        %s306 = sand.u32 %s33, 1
        %s307 = smul.addr %s306, 256
        %s308 = scalar_lea.vmem [#allocation2], %s307
        %p309 = pneg %p46
        %p310 = pneg %p43
        %s311 = sand.u32 %s25, 1
        %s312 = scalar_lea.sflag [#allocation6], %s311
        %s313 = sand.u32 %s59, 1
        %s314 = smul.addr %s313, 512
        %s315 = scalar_lea.vmem [#allocation5], %s314
        %p316 = pneg %p72
        %p317 = pneg %p69
        %s318 = sand.u32 %s25, 1
        %s319 = scalar_lea.sflag [#allocation6], %s318
        %s320 = sand.u32 %s85, 1
        %s321 = smul.addr %s320, 512
        %s322 = scalar_lea.vmem [#allocation7], %s321
        %p323 = pneg %p98
        %p324 = pneg %p95
        %p325 = pneg %p119
        %p326 = pneg %p116
        %p327 = pneg %p145
        %p328 = pneg %p142
        %s329 = sand.u32 %s132, 1
        %s330 = scalar_lea.sflag [#allocation4], %s329
        %s331 = sand.u32 %s132, 1
        %s332 = smul.addr %s331, 64
        %s333 = scalar_lea.vmem [#allocation10], %s332
        %s334 = smul.u32 8, %s25
        %s335 = smul.u32 64, %s25
        %s336 = smul.u32 64, %s25
        %s337 = smul.u32 8, %s25
        %v339 = vld [vmem:[%s277] sm:$0xff]
        %v340 = vld [vmem:[%s277 + $0x8] sm:$0xff]
        %v341 = vld [vmem:[%s277 + $0x10] sm:$0xff]
        %v342 = vld [vmem:[%s277 + $0x18] sm:$0xff]
        %v343 = vld [vmem:[%s277 + $0x20] sm:$0xff]
        %v344 = vld [vmem:[%s277 + $0x28] sm:$0xff]
        %v345 = vld [vmem:[%s277 + $0x30] sm:$0xff]
        %v346 = vld [vmem:[%s277 + $0x38] sm:$0xff]
        %s347 = scalar_lea.vmem %s277, 64 [#allocation2]
        %v348 = vld [vmem:[%s347] sm:$0xff]
        %v349 = vld [vmem:[%s347 + $0x8] sm:$0xff]
        %v350 = vld [vmem:[%s347 + $0x10] sm:$0xff]
        %v351 = vld [vmem:[%s347 + $0x18] sm:$0xff]
        %v352 = vld [vmem:[%s347 + $0x20] sm:$0xff]
        %v353 = vld [vmem:[%s347 + $0x28] sm:$0xff]
        %v354 = vld [vmem:[%s347 + $0x30] sm:$0xff]
        %v355 = vld [vmem:[%s347 + $0x38] sm:$0xff]
        %s356 = scalar_lea.vmem %s277, 128 [#allocation2]
        %v357 = vld [vmem:[%s356] sm:$0xff]
        %v358 = vld [vmem:[%s356 + $0x8] sm:$0xff]
        %v359 = vld [vmem:[%s356 + $0x10] sm:$0xff]
        %v360 = vld [vmem:[%s356 + $0x18] sm:$0xff]
        %v361 = vld [vmem:[%s356 + $0x20] sm:$0xff]
        %v362 = vld [vmem:[%s356 + $0x28] sm:$0xff]
        %v363 = vld [vmem:[%s356 + $0x30] sm:$0xff]
        %v364 = vld [vmem:[%s356 + $0x38] sm:$0xff]
        %s365 = scalar_lea.vmem %s277, 192 [#allocation2]
        %v366 = vld [vmem:[%s365] sm:$0xff]
        %v367 = vld [vmem:[%s365 + $0x8] sm:$0xff]
        %v368 = vld [vmem:[%s365 + $0x10] sm:$0xff]
        %v369 = vld [vmem:[%s365 + $0x18] sm:$0xff]
        %v370 = vld [vmem:[%s365 + $0x20] sm:$0xff]
        %v371 = vld [vmem:[%s365 + $0x28] sm:$0xff]
        %v372 = vld [vmem:[%s365 + $0x30] sm:$0xff]
        %v373 = vld [vmem:[%s365 + $0x38] sm:$0xff]
        %v374 = vpack.c.bf16 %v340, %v339
        %v375 = vpack.c.bf16 %v342, %v341
        %v376 = vpack.c.bf16 %v344, %v343
        %v377 = vpack.c.bf16 %v346, %v345
        %v378 = vld [vmem:[#allocation8 + $0x80] sm:$0xf]
        %v379 = vld [vmem:[#allocation8 + $0x84] sm:$0xf]
        %v380 = vld [vmem:[#allocation8 + $0x88] sm:$0xf]
        %v381 = vld [vmem:[#allocation8 + $0x8c] sm:$0xf]
        %v382 = vld [vmem:[#allocation8 + $0x90] sm:$0xf]
        %v383 = vld [vmem:[#allocation8 + $0x94] sm:$0xf]
        %v384 = vld [vmem:[#allocation8 + $0x98] sm:$0xf]
        %v385 = vld [vmem:[#allocation8 + $0x9c] sm:$0xf]
        %v386 = vld [vmem:[#allocation8 + $0xa0] sm:$0xf]
        %v387 = vld [vmem:[#allocation8 + $0xa4] sm:$0xf]
        %v388 = vld [vmem:[#allocation8 + $0xa8] sm:$0xf]
        %v389 = vld [vmem:[#allocation8 + $0xac] sm:$0xf]
        %v390 = vld [vmem:[#allocation8 + $0xb0] sm:$0xf]
        %v391 = vld [vmem:[#allocation8 + $0xb4] sm:$0xf]
        %v392 = vld [vmem:[#allocation8 + $0xb8] sm:$0xf]
        %v393 = vld [vmem:[#allocation8 + $0xbc] sm:$0xf]
        %v410 = vunpack.c.l.b16 %v378
        %v411 = vunpack.c.l.b16 %v379
        %v412 = vunpack.c.l.b16 %v380
        %v413 = vunpack.c.l.b16 %v381
        %v414 = vunpack.c.l.b16 %v382
        %v415 = vunpack.c.l.b16 %v383
        %v416 = vunpack.c.l.b16 %v384
        %v417 = vunpack.c.l.b16 %v385
        %v418 = vunpack.c.l.b16 %v386
        %v419 = vunpack.c.l.b16 %v387
        %v420 = vunpack.c.l.b16 %v388
        %v421 = vunpack.c.l.b16 %v389
        %v422 = vunpack.c.l.b16 %v390
        %v423 = vunpack.c.l.b16 %v391
        %v424 = vunpack.c.l.b16 %v392
        %v425 = vunpack.c.l.b16 %v393
        %v426 = vpack.c.b16 %v411, %v410
        %v427 = vpack.c.b16 %v413, %v412
        %v428 = vpack.c.b16 %v415, %v414
        %v429 = vpack.c.b16 %v417, %v416
        %v430 = vpack.c.b16 %v419, %v418
        %v431 = vpack.c.b16 %v421, %v420
        %v432 = vpack.c.b16 %v423, %v422
        %v433 = vpack.c.b16 %v425, %v424
        %442 = vmatprep.subr.bf16.mxu0 0
        %443 = vmatpush1.bf16.msra.mxu0 %v426
        %444 = vmatprep.subr.bf16.mxu0 0
        %445 = vmatpush1.bf16.msra.mxu0 %v427
        %446 = vmatprep.subr.bf16.mxu0 0
        %447 = vmatpush1.bf16.msra.mxu0 %v428
        %448 = vmatprep.subr.bf16.mxu0 0
        %449 = vmatpush1.bf16.msra.mxu0 %v429
        %450 = vmatprep.subr.bf16.mxu0 0
        %451 = vmatpush1.bf16.msra.mxu0 %v430
        %452 = vmatprep.subr.bf16.mxu0 0
        %453 = vmatpush1.bf16.msra.mxu0 %v431
        %454 = vmatprep.subr.bf16.mxu0 0
        %455 = vmatpush1.bf16.msra.mxu0 %v432
        %456 = vmatprep.subr.bf16.mxu0 0
        %457 = vmatpush1.bf16.msra.mxu0 %v433
        %458 = vmatprep.subr.bf16.mxu0 0
        %459 = vmatpush1.bf16.msra.mxu0 0
        %460 = vmatprep.subr.bf16.mxu0 0
        %461 = vmatpush1.bf16.msra.mxu0 0
        %462 = vmatprep.subr.bf16.mxu0 0
        %463 = vmatpush1.bf16.msra.mxu0 0
        %464 = vmatprep.subr.bf16.mxu0 0
        %465 = vmatpush1.bf16.msra.mxu0 0
        %466 = vmatprep.subr.bf16.mxu0 0
        %467 = vmatpush1.bf16.msra.mxu0 0
        %468 = vmatprep.subr.bf16.mxu0 0
        %469 = vmatpush1.bf16.msra.mxu0 0
        %470 = vmatprep.subr.bf16.mxu0 0
        %471 = vmatpush1.bf16.msra.mxu0 0
        %472 = vmatprep.subr.bf16.mxu0 0
        %473 = vmatpush1.bf16.msra.mxu0 0
        %474 = vmatprep.mubr.bf16.mxu0 0
        %475 = vmatmul.mubr.bf16.gmra.mrb[0].mxu0 %v374
        %v476 = vpop.f32.mrb[0].mxu0
        %v477 = vadd.f32 0.0, %v476
        %v478 = vpop.f32.mrb[0].mxu0
        %v479 = vpop.f32.mrb[0].mxu0
        %v480 = vadd.f32 0.0, %v479
        %v481 = vpop.f32.mrb[0].mxu0
        %482 = vmatprep.mubr.bf16.mxu0 0
        %483 = vmatmul.mubr.bf16.gmra.mrb[0].mxu0 %v375
        %v484 = vpop.f32.mrb[0].mxu0
        %v485 = vadd.f32 0.0, %v484
        %v486 = vpop.f32.mrb[0].mxu0
        %v487 = vpop.f32.mrb[0].mxu0
        %v488 = vadd.f32 0.0, %v487
        %v489 = vpop.f32.mrb[0].mxu0
        %490 = vmatprep.mubr.bf16.mxu0 0
        %491 = vmatmul.mubr.bf16.gmra.mrb[0].mxu0 %v376
        %v492 = vpop.f32.mrb[0].mxu0
        %v493 = vadd.f32 0.0, %v492
        %v494 = vpop.f32.mrb[0].mxu0
        %v495 = vpop.f32.mrb[0].mxu0
        %v496 = vadd.f32 0.0, %v495
        %v497 = vpop.f32.mrb[0].mxu0
        %498 = vmatprep.mubr.bf16.mxu0 0
        %499 = vmatmul.mubr.bf16.gmra.mrb[0].mxu0 %v377
        %v500 = vpop.f32.mrb[0].mxu0
        %v501 = vadd.f32 0.0, %v500
        %v502 = vpop.f32.mrb[0].mxu0
        %v503 = vpop.f32.mrb[0].mxu0
        %v504 = vadd.f32 0.0, %v503
        %v505 = vpop.f32.mrb[0].mxu0
        %506 = vdwg.mxu0
        %v507 = vld [vmem:[%s286] sm:$0xff]
        %v508 = vld [vmem:[%s286 + $0x8] sm:$0xff]
        %v509 = vld [vmem:[%s286 + $0x10] sm:$0xff]
        %v510 = vld [vmem:[%s286 + $0x18] sm:$0xff]
        %v511 = vld [vmem:[%s286 + $0x20] sm:$0xff]
        %v512 = vld [vmem:[%s286 + $0x28] sm:$0xff]
        %v513 = vld [vmem:[%s286 + $0x30] sm:$0xff]
        %v514 = vld [vmem:[%s286 + $0x38] sm:$0xff]
        %v515 = vld [vmem:[%s286 + $0x40] sm:$0xff]
        %v516 = vld [vmem:[%s286 + $0x48] sm:$0xff]
        %v517 = vld [vmem:[%s286 + $0x50] sm:$0xff]
        %v518 = vld [vmem:[%s286 + $0x58] sm:$0xff]
        %v519 = vld [vmem:[%s286 + $0x60] sm:$0xff]
        %v520 = vld [vmem:[%s286 + $0x68] sm:$0xff]
        %v521 = vld [vmem:[%s286 + $0x70] sm:$0xff]
        %v522 = vld [vmem:[%s286 + $0x78] sm:$0xff]
        %v523 = vld [vmem:[%s286 + $0x80] sm:$0xff]
        %v524 = vld [vmem:[%s286 + $0x88] sm:$0xff]
        %v525 = vld [vmem:[%s286 + $0x90] sm:$0xff]
        %v526 = vld [vmem:[%s286 + $0x98] sm:$0xff]
        %v527 = vld [vmem:[%s286 + $0xa0] sm:$0xff]
        %v528 = vld [vmem:[%s286 + $0xa8] sm:$0xff]
        %v529 = vld [vmem:[%s286 + $0xb0] sm:$0xff]
        %v530 = vld [vmem:[%s286 + $0xb8] sm:$0xff]
        %v531 = vld [vmem:[%s286 + $0xc0] sm:$0xff]
        %v532 = vld [vmem:[%s286 + $0xc8] sm:$0xff]
        %v533 = vld [vmem:[%s286 + $0xd0] sm:$0xff]
        %v534 = vld [vmem:[%s286 + $0xd8] sm:$0xff]
        %v535 = vld [vmem:[%s286 + $0xe0] sm:$0xff]
        %v536 = vld [vmem:[%s286 + $0xe8] sm:$0xff]
        %v537 = vld [vmem:[%s286 + $0xf0] sm:$0xff]
        %v538 = vld [vmem:[%s286 + $0xf8] sm:$0xff]
        %v539 = vld [vmem:[%s286 + $0x100] sm:$0xff]
        %v540 = vld [vmem:[%s286 + $0x108] sm:$0xff]
        %v541 = vld [vmem:[%s286 + $0x110] sm:$0xff]
        %v542 = vld [vmem:[%s286 + $0x118] sm:$0xff]
        %v543 = vld [vmem:[%s286 + $0x120] sm:$0xff]
        %v544 = vld [vmem:[%s286 + $0x128] sm:$0xff]
        %v545 = vld [vmem:[%s286 + $0x130] sm:$0xff]
        %v546 = vld [vmem:[%s286 + $0x138] sm:$0xff]
        %v547 = vld [vmem:[%s286 + $0x140] sm:$0xff]
        %v548 = vld [vmem:[%s286 + $0x148] sm:$0xff]
        %v549 = vld [vmem:[%s286 + $0x150] sm:$0xff]
        %v550 = vld [vmem:[%s286 + $0x158] sm:$0xff]
        %v551 = vld [vmem:[%s286 + $0x160] sm:$0xff]
        %v552 = vld [vmem:[%s286 + $0x168] sm:$0xff]
        %v553 = vld [vmem:[%s286 + $0x170] sm:$0xff]
        %v554 = vld [vmem:[%s286 + $0x178] sm:$0xff]
        %v555 = vld [vmem:[%s286 + $0x180] sm:$0xff]
        %v556 = vld [vmem:[%s286 + $0x188] sm:$0xff]
        %v557 = vld [vmem:[%s286 + $0x190] sm:$0xff]
        %v558 = vld [vmem:[%s286 + $0x198] sm:$0xff]
        %v559 = vld [vmem:[%s286 + $0x1a0] sm:$0xff]
        %v560 = vld [vmem:[%s286 + $0x1a8] sm:$0xff]
        %v561 = vld [vmem:[%s286 + $0x1b0] sm:$0xff]
        %v562 = vld [vmem:[%s286 + $0x1b8] sm:$0xff]
        %v563 = vld [vmem:[%s286 + $0x1c0] sm:$0xff]
        %v564 = vld [vmem:[%s286 + $0x1c8] sm:$0xff]
        %v565 = vld [vmem:[%s286 + $0x1d0] sm:$0xff]
        %v566 = vld [vmem:[%s286 + $0x1d8] sm:$0xff]
        %v567 = vld [vmem:[%s286 + $0x1e0] sm:$0xff]
        %v568 = vld [vmem:[%s286 + $0x1e8] sm:$0xff]
        %v569 = vld [vmem:[%s286 + $0x1f0] sm:$0xff]
        %v570 = vld [vmem:[%s286 + $0x1f8] sm:$0xff]
        %v571 = vld [vmem:[#allocation8] sm:$0xf]
        %v572 = vld [vmem:[#allocation8 + $0x4] sm:$0xf]
        %v573 = vld [vmem:[#allocation8 + $0x8] sm:$0xf]
        %v574 = vld [vmem:[#allocation8 + $0xc] sm:$0xf]
        %v575 = vld [vmem:[#allocation8 + $0x10] sm:$0xf]
        %v576 = vld [vmem:[#allocation8 + $0x14] sm:$0xf]
        %v577 = vld [vmem:[#allocation8 + $0x18] sm:$0xf]
        %v578 = vld [vmem:[#allocation8 + $0x1c] sm:$0xf]
        %v579 = vld [vmem:[#allocation8 + $0x20] sm:$0xf]
        %v580 = vld [vmem:[#allocation8 + $0x24] sm:$0xf]
        %v581 = vld [vmem:[#allocation8 + $0x28] sm:$0xf]
        %v582 = vld [vmem:[#allocation8 + $0x2c] sm:$0xf]
        %v583 = vld [vmem:[#allocation8 + $0x30] sm:$0xf]
        %v584 = vld [vmem:[#allocation8 + $0x34] sm:$0xf]
        %v585 = vld [vmem:[#allocation8 + $0x38] sm:$0xf]
        %v586 = vld [vmem:[#allocation8 + $0x3c] sm:$0xf]
        %v587 = vld [vmem:[#allocation8 + $0x40] sm:$0xf]
        %v588 = vld [vmem:[#allocation8 + $0x44] sm:$0xf]
        %v589 = vld [vmem:[#allocation8 + $0x48] sm:$0xf]
        %v590 = vld [vmem:[#allocation8 + $0x4c] sm:$0xf]
        %v591 = vld [vmem:[#allocation8 + $0x50] sm:$0xf]
        %v592 = vld [vmem:[#allocation8 + $0x54] sm:$0xf]
        %v593 = vld [vmem:[#allocation8 + $0x58] sm:$0xf]
        %v594 = vld [vmem:[#allocation8 + $0x5c] sm:$0xf]
        %v595 = vld [vmem:[#allocation8 + $0x60] sm:$0xf]
        %v596 = vld [vmem:[#allocation8 + $0x64] sm:$0xf]
        %v597 = vld [vmem:[#allocation8 + $0x68] sm:$0xf]
        %v598 = vld [vmem:[#allocation8 + $0x6c] sm:$0xf]
        %v599 = vld [vmem:[#allocation8 + $0x70] sm:$0xf]
        %v600 = vld [vmem:[#allocation8 + $0x74] sm:$0xf]
        %v601 = vld [vmem:[#allocation8 + $0x78] sm:$0xf]
        %v602 = vld [vmem:[#allocation8 + $0x7c] sm:$0xf]
        %v667 = vunpack.c.l.b16 %v507
        %v668 = vunpack.c.h.b16 %v507
        %v669 = vunpack.c.l.b16 %v508
        %v670 = vunpack.c.h.b16 %v508
        %v671 = vunpack.c.l.b16 %v509
        %v672 = vunpack.c.h.b16 %v509
        %v673 = vunpack.c.l.b16 %v510
        %v674 = vunpack.c.h.b16 %v510
        %v675 = vunpack.c.l.b16 %v511
        %v676 = vunpack.c.h.b16 %v511
        %v677 = vunpack.c.l.b16 %v512
        %v678 = vunpack.c.h.b16 %v512
        %v679 = vunpack.c.l.b16 %v513
        %v680 = vunpack.c.h.b16 %v513
        %v681 = vunpack.c.l.b16 %v514
        %v682 = vunpack.c.h.b16 %v514
        %v683 = vunpack.c.l.b16 %v515
        %v684 = vunpack.c.h.b16 %v515
        %v685 = vunpack.c.l.b16 %v516
        %v686 = vunpack.c.h.b16 %v516
        %v687 = vunpack.c.l.b16 %v517
        %v688 = vunpack.c.h.b16 %v517
        %v689 = vunpack.c.l.b16 %v518
        %v690 = vunpack.c.h.b16 %v518
        %v691 = vunpack.c.l.b16 %v519
        %v692 = vunpack.c.h.b16 %v519
        %v693 = vunpack.c.l.b16 %v520
        %v694 = vunpack.c.h.b16 %v520
        %v695 = vunpack.c.l.b16 %v521
        %v696 = vunpack.c.h.b16 %v521
        %v697 = vunpack.c.l.b16 %v522
        %v698 = vunpack.c.h.b16 %v522
        %v699 = vunpack.c.l.b16 %v523
        %v700 = vunpack.c.h.b16 %v523
        %v701 = vunpack.c.l.b16 %v524
        %v702 = vunpack.c.h.b16 %v524
        %v703 = vunpack.c.l.b16 %v525
        %v704 = vunpack.c.h.b16 %v525
        %v705 = vunpack.c.l.b16 %v526
        %v706 = vunpack.c.h.b16 %v526
        %v707 = vunpack.c.l.b16 %v527
        %v708 = vunpack.c.h.b16 %v527
        %v709 = vunpack.c.l.b16 %v528
        %v710 = vunpack.c.h.b16 %v528
        %v711 = vunpack.c.l.b16 %v529
        %v712 = vunpack.c.h.b16 %v529
        %v713 = vunpack.c.l.b16 %v530
        %v714 = vunpack.c.h.b16 %v530
        %v715 = vunpack.c.l.b16 %v531
        %v716 = vunpack.c.h.b16 %v531
        %v717 = vunpack.c.l.b16 %v532
        %v718 = vunpack.c.h.b16 %v532
        %v719 = vunpack.c.l.b16 %v533
        %v720 = vunpack.c.h.b16 %v533
        %v721 = vunpack.c.l.b16 %v534
        %v722 = vunpack.c.h.b16 %v534
        %v723 = vunpack.c.l.b16 %v535
        %v724 = vunpack.c.h.b16 %v535
        %v725 = vunpack.c.l.b16 %v536
        %v726 = vunpack.c.h.b16 %v536
        %v727 = vunpack.c.l.b16 %v537
        %v728 = vunpack.c.h.b16 %v537
        %v729 = vunpack.c.l.b16 %v538
        %v730 = vunpack.c.h.b16 %v538
        %v731 = vunpack.c.l.b16 %v539
        %v732 = vunpack.c.h.b16 %v539
        %v733 = vunpack.c.l.b16 %v540
        %v734 = vunpack.c.h.b16 %v540
        %v735 = vunpack.c.l.b16 %v541
        %v736 = vunpack.c.h.b16 %v541
        %v737 = vunpack.c.l.b16 %v542
        %v738 = vunpack.c.h.b16 %v542
        %v739 = vunpack.c.l.b16 %v543
        %v740 = vunpack.c.h.b16 %v543
        %v741 = vunpack.c.l.b16 %v544
        %v742 = vunpack.c.h.b16 %v544
        %v743 = vunpack.c.l.b16 %v545
        %v744 = vunpack.c.h.b16 %v545
        %v745 = vunpack.c.l.b16 %v546
        %v746 = vunpack.c.h.b16 %v546
        %v747 = vunpack.c.l.b16 %v547
        %v748 = vunpack.c.h.b16 %v547
        %v749 = vunpack.c.l.b16 %v548
        %v750 = vunpack.c.h.b16 %v548
        %v751 = vunpack.c.l.b16 %v549
        %v752 = vunpack.c.h.b16 %v549
        %v753 = vunpack.c.l.b16 %v550
        %v754 = vunpack.c.h.b16 %v550
        %v755 = vunpack.c.l.b16 %v551
        %v756 = vunpack.c.h.b16 %v551
        %v757 = vunpack.c.l.b16 %v552
        %v758 = vunpack.c.h.b16 %v552
        %v759 = vunpack.c.l.b16 %v553
        %v760 = vunpack.c.h.b16 %v553
        %v761 = vunpack.c.l.b16 %v554
        %v762 = vunpack.c.h.b16 %v554
        %v763 = vunpack.c.l.b16 %v555
        %v764 = vunpack.c.h.b16 %v555
        %v765 = vunpack.c.l.b16 %v556
        %v766 = vunpack.c.h.b16 %v556
        %v767 = vunpack.c.l.b16 %v557
        %v768 = vunpack.c.h.b16 %v557
        %v769 = vunpack.c.l.b16 %v558
        %v770 = vunpack.c.h.b16 %v558
        %v771 = vunpack.c.l.b16 %v559
        %v772 = vunpack.c.h.b16 %v559
        %v773 = vunpack.c.l.b16 %v560
        %v774 = vunpack.c.h.b16 %v560
        %v775 = vunpack.c.l.b16 %v561
        %v776 = vunpack.c.h.b16 %v561
        %v777 = vunpack.c.l.b16 %v562
        %v778 = vunpack.c.h.b16 %v562
        %v779 = vunpack.c.l.b16 %v563
        %v780 = vunpack.c.h.b16 %v563
        %v781 = vunpack.c.l.b16 %v564
        %v782 = vunpack.c.h.b16 %v564
        %v783 = vunpack.c.l.b16 %v565
        %v784 = vunpack.c.h.b16 %v565
        %v785 = vunpack.c.l.b16 %v566
        %v786 = vunpack.c.h.b16 %v566
        %v787 = vunpack.c.l.b16 %v567
        %v788 = vunpack.c.h.b16 %v567
        %v789 = vunpack.c.l.b16 %v568
        %v790 = vunpack.c.h.b16 %v568
        %v791 = vunpack.c.l.b16 %v569
        %v792 = vunpack.c.h.b16 %v569
        %v793 = vunpack.c.l.b16 %v570
        %v794 = vunpack.c.h.b16 %v570
        %v795 = vpack.c.b16 %v669, %v667
        %v796 = vpack.c.b16 %v670, %v668
        %v797 = vpack.c.b16 %v673, %v671
        %v798 = vpack.c.b16 %v674, %v672
        %v799 = vpack.c.b16 %v677, %v675
        %v800 = vpack.c.b16 %v678, %v676
        %v801 = vpack.c.b16 %v681, %v679
        %v802 = vpack.c.b16 %v682, %v680
        %v803 = vpack.c.b16 %v685, %v683
        %v804 = vpack.c.b16 %v686, %v684
        %v805 = vpack.c.b16 %v689, %v687
        %v806 = vpack.c.b16 %v690, %v688
        %v807 = vpack.c.b16 %v693, %v691
        %v808 = vpack.c.b16 %v694, %v692
        %v809 = vpack.c.b16 %v697, %v695
        %v810 = vpack.c.b16 %v698, %v696
        %v811 = vpack.c.b16 %v701, %v699
        %v812 = vpack.c.b16 %v702, %v700
        %v813 = vpack.c.b16 %v705, %v703
        %v814 = vpack.c.b16 %v706, %v704
        %v815 = vpack.c.b16 %v709, %v707
        %v816 = vpack.c.b16 %v710, %v708
        %v817 = vpack.c.b16 %v713, %v711
        %v818 = vpack.c.b16 %v714, %v712
        %v819 = vpack.c.b16 %v717, %v715
        %v820 = vpack.c.b16 %v718, %v716
        %v821 = vpack.c.b16 %v721, %v719
        %v822 = vpack.c.b16 %v722, %v720
        %v823 = vpack.c.b16 %v725, %v723
        %v824 = vpack.c.b16 %v726, %v724
        %v825 = vpack.c.b16 %v729, %v727
        %v826 = vpack.c.b16 %v730, %v728
        %v827 = vpack.c.b16 %v733, %v731
        %v828 = vpack.c.b16 %v734, %v732
        %v829 = vpack.c.b16 %v737, %v735
        %v830 = vpack.c.b16 %v738, %v736
        %v831 = vpack.c.b16 %v741, %v739
        %v832 = vpack.c.b16 %v742, %v740
        %v833 = vpack.c.b16 %v745, %v743
        %v834 = vpack.c.b16 %v746, %v744
        %v835 = vpack.c.b16 %v749, %v747
        %v836 = vpack.c.b16 %v750, %v748
        %v837 = vpack.c.b16 %v753, %v751
        %v838 = vpack.c.b16 %v754, %v752
        %v839 = vpack.c.b16 %v757, %v755
        %v840 = vpack.c.b16 %v758, %v756
        %v841 = vpack.c.b16 %v761, %v759
        %v842 = vpack.c.b16 %v762, %v760
        %v843 = vpack.c.b16 %v765, %v763
        %v844 = vpack.c.b16 %v766, %v764
        %v845 = vpack.c.b16 %v769, %v767
        %v846 = vpack.c.b16 %v770, %v768
        %v847 = vpack.c.b16 %v773, %v771
        %v848 = vpack.c.b16 %v774, %v772
        %v849 = vpack.c.b16 %v777, %v775
        %v850 = vpack.c.b16 %v778, %v776
        %v851 = vpack.c.b16 %v781, %v779
        %v852 = vpack.c.b16 %v782, %v780
        %v853 = vpack.c.b16 %v785, %v783
        %v854 = vpack.c.b16 %v786, %v784
        %v855 = vpack.c.b16 %v789, %v787
        %v856 = vpack.c.b16 %v790, %v788
        %v857 = vpack.c.b16 %v793, %v791
        %v858 = vpack.c.b16 %v794, %v792
        %v955 = vunpack.c.l.b16 %v571
        %v956 = vunpack.c.l.b16 %v572
        %v957 = vunpack.c.l.b16 %v573
        %v958 = vunpack.c.l.b16 %v574
        %v959 = vunpack.c.l.b16 %v575
        %v960 = vunpack.c.l.b16 %v576
        %v961 = vunpack.c.l.b16 %v577
        %v962 = vunpack.c.l.b16 %v578
        %v963 = vunpack.c.l.b16 %v579
        %v964 = vunpack.c.l.b16 %v580
        %v965 = vunpack.c.l.b16 %v581
        %v966 = vunpack.c.l.b16 %v582
        %v967 = vunpack.c.l.b16 %v583
        %v968 = vunpack.c.l.b16 %v584
        %v969 = vunpack.c.l.b16 %v585
        %v970 = vunpack.c.l.b16 %v586
        %v971 = vunpack.c.l.b16 %v587
        %v972 = vunpack.c.l.b16 %v588
        %v973 = vunpack.c.l.b16 %v589
        %v974 = vunpack.c.l.b16 %v590
        %v975 = vunpack.c.l.b16 %v591
        %v976 = vunpack.c.l.b16 %v592
        %v977 = vunpack.c.l.b16 %v593
        %v978 = vunpack.c.l.b16 %v594
        %v979 = vunpack.c.l.b16 %v595
        %v980 = vunpack.c.l.b16 %v596
        %v981 = vunpack.c.l.b16 %v597
        %v982 = vunpack.c.l.b16 %v598
        %v983 = vunpack.c.l.b16 %v599
        %v984 = vunpack.c.l.b16 %v600
        %v985 = vunpack.c.l.b16 %v601
        %v986 = vunpack.c.l.b16 %v602
        %v987 = vpack.c.b16 %v956, %v955
        %v988 = vpack.c.b16 %v958, %v957
        %v989 = vpack.c.b16 %v960, %v959
        %v990 = vpack.c.b16 %v962, %v961
        %v991 = vpack.c.b16 %v964, %v963
        %v992 = vpack.c.b16 %v966, %v965
        %v993 = vpack.c.b16 %v968, %v967
        %v994 = vpack.c.b16 %v970, %v969
        %v995 = vpack.c.b16 %v972, %v971
        %v996 = vpack.c.b16 %v974, %v973
        %v997 = vpack.c.b16 %v976, %v975
        %v998 = vpack.c.b16 %v978, %v977
        %v999 = vpack.c.b16 %v980, %v979
        %v1000 = vpack.c.b16 %v982, %v981
        %v1001 = vpack.c.b16 %v984, %v983
        %v1002 = vpack.c.b16 %v986, %v985
        %1019 = vmatprep.subr.bf16.mxu0 0
        %1020 = vmatpush1.bf16.msra.mxu0 %v987
        %1021 = vmatprep.subr.bf16.mxu0 0
        %1022 = vmatpush1.bf16.msra.mxu0 %v988
        %1023 = vmatprep.subr.bf16.mxu0 0
        %1024 = vmatpush1.bf16.msra.mxu0 %v989
        %1025 = vmatprep.subr.bf16.mxu0 0
        %1026 = vmatpush1.bf16.msra.mxu0 %v990
        %1027 = vmatprep.subr.bf16.mxu0 0
        %1028 = vmatpush1.bf16.msra.mxu0 %v991
        %1029 = vmatprep.subr.bf16.mxu0 0
        %1030 = vmatpush1.bf16.msra.mxu0 %v992
        %1031 = vmatprep.subr.bf16.mxu0 0
        %1032 = vmatpush1.bf16.msra.mxu0 %v993
        %1033 = vmatprep.subr.bf16.mxu0 0
        %1034 = vmatpush1.bf16.msra.mxu0 %v994
        %1035 = vmatprep.subr.bf16.mxu0 0
        %1036 = vmatpush1.bf16.msra.mxu0 %v995
        %1037 = vmatprep.subr.bf16.mxu0 0
        %1038 = vmatpush1.bf16.msra.mxu0 %v996
        %1039 = vmatprep.subr.bf16.mxu0 0
        %1040 = vmatpush1.bf16.msra.mxu0 %v997
        %1041 = vmatprep.subr.bf16.mxu0 0
        %1042 = vmatpush1.bf16.msra.mxu0 %v998
        %1043 = vmatprep.subr.bf16.mxu0 0
        %1044 = vmatpush1.bf16.msra.mxu0 %v999
        %1045 = vmatprep.subr.bf16.mxu0 0
        %1046 = vmatpush1.bf16.msra.mxu0 %v1000
        %1047 = vmatprep.subr.bf16.mxu0 0
        %1048 = vmatpush1.bf16.msra.mxu0 %v1001
        %1049 = vmatprep.subr.bf16.mxu0 0
        %1050 = vmatpush1.bf16.msra.mxu0 %v1002
        %1051 = vmatprep.mubr.bf16.mxu0 %v796
        %1052 = vmatmul.mubr.bf16.gmra.mrb[0].mxu0 %v795
        %v1053 = vpop.f32.mrb[0].mxu0
        %v1054 = vadd.f32 0.0, %v1053
        %v1055 = vpop.f32.mrb[0].mxu0
        %v1056 = vpop.f32.mrb[0].mxu0
        %v1057 = vadd.f32 0.0, %v1056
        %v1058 = vpop.f32.mrb[0].mxu0
        %1059 = vmatprep.mubr.bf16.mxu0 %v798
        %1060 = vmatmul.mubr.bf16.gmra.mrb[0].mxu0 %v797
        %v1061 = vpop.f32.mrb[0].mxu0
        %v1062 = vadd.f32 0.0, %v1061
        %v1063 = vpop.f32.mrb[0].mxu0
        %v1064 = vpop.f32.mrb[0].mxu0
        %v1065 = vadd.f32 0.0, %v1064
        %v1066 = vpop.f32.mrb[0].mxu0
        %1067 = vmatprep.mubr.bf16.mxu0 %v800
        %1068 = vmatmul.mubr.bf16.gmra.mrb[0].mxu0 %v799
        %v1069 = vpop.f32.mrb[0].mxu0
        %v1070 = vadd.f32 0.0, %v1069
        %v1071 = vpop.f32.mrb[0].mxu0
        %v1072 = vpop.f32.mrb[0].mxu0
        %v1073 = vadd.f32 0.0, %v1072
        %v1074 = vpop.f32.mrb[0].mxu0
        %1075 = vmatprep.mubr.bf16.mxu0 %v802
        %1076 = vmatmul.mubr.bf16.gmra.mrb[0].mxu0 %v801
        %v1077 = vpop.f32.mrb[0].mxu0
        %v1078 = vadd.f32 0.0, %v1077
        %v1079 = vpop.f32.mrb[0].mxu0
        %v1080 = vpop.f32.mrb[0].mxu0
        %v1081 = vadd.f32 0.0, %v1080
        %v1082 = vpop.f32.mrb[0].mxu0
        %1083 = vmatprep.mubr.bf16.mxu0 %v804
        %1084 = vmatmul.mubr.bf16.gmra.mrb[0].mxu0 %v803
        %v1085 = vpop.f32.mrb[0].mxu0
        %v1086 = vadd.f32 0.0, %v1085
        %v1087 = vpop.f32.mrb[0].mxu0
        %v1088 = vpop.f32.mrb[0].mxu0
        %v1089 = vadd.f32 0.0, %v1088
        %v1090 = vpop.f32.mrb[0].mxu0
        %1091 = vmatprep.mubr.bf16.mxu0 %v806
        %1092 = vmatmul.mubr.bf16.gmra.mrb[0].mxu0 %v805
        %v1093 = vpop.f32.mrb[0].mxu0
        %v1094 = vadd.f32 0.0, %v1093
        %v1095 = vpop.f32.mrb[0].mxu0
        %v1096 = vpop.f32.mrb[0].mxu0
        %v1097 = vadd.f32 0.0, %v1096
        %v1098 = vpop.f32.mrb[0].mxu0
        %1099 = vmatprep.mubr.bf16.mxu0 %v808
        %1100 = vmatmul.mubr.bf16.gmra.mrb[0].mxu0 %v807
        %v1101 = vpop.f32.mrb[0].mxu0
        %v1102 = vadd.f32 0.0, %v1101
        %v1103 = vpop.f32.mrb[0].mxu0
        %v1104 = vpop.f32.mrb[0].mxu0
        %v1105 = vadd.f32 0.0, %v1104
        %v1106 = vpop.f32.mrb[0].mxu0
        %1107 = vmatprep.mubr.bf16.mxu0 %v810
        %1108 = vmatmul.mubr.bf16.gmra.mrb[0].mxu0 %v809
        %v1109 = vpop.f32.mrb[0].mxu0
        %v1110 = vadd.f32 0.0, %v1109
        %v1111 = vpop.f32.mrb[0].mxu0
        %v1112 = vpop.f32.mrb[0].mxu0
        %v1113 = vadd.f32 0.0, %v1112
        %v1114 = vpop.f32.mrb[0].mxu0
        %1115 = vmatprep.mubr.bf16.mxu0 %v812
        %1116 = vmatmul.mubr.bf16.gmra.mrb[0].mxu0 %v811
        %v1117 = vpop.f32.mrb[0].mxu0
        %v1118 = vadd.f32 0.0, %v1117
        %v1119 = vpop.f32.mrb[0].mxu0
        %v1120 = vpop.f32.mrb[0].mxu0
        %v1121 = vadd.f32 0.0, %v1120
        %v1122 = vpop.f32.mrb[0].mxu0
        %1123 = vmatprep.mubr.bf16.mxu0 %v814
        %1124 = vmatmul.mubr.bf16.gmra.mrb[0].mxu0 %v813
        %v1125 = vpop.f32.mrb[0].mxu0
        %v1126 = vadd.f32 0.0, %v1125
        %v1127 = vpop.f32.mrb[0].mxu0
        %v1128 = vpop.f32.mrb[0].mxu0
        %v1129 = vadd.f32 0.0, %v1128
        %v1130 = vpop.f32.mrb[0].mxu0
        %1131 = vmatprep.mubr.bf16.mxu0 %v816
        %1132 = vmatmul.mubr.bf16.gmra.mrb[0].mxu0 %v815
        %v1133 = vpop.f32.mrb[0].mxu0
        %v1134 = vadd.f32 0.0, %v1133
        %v1135 = vpop.f32.mrb[0].mxu0
        %v1136 = vpop.f32.mrb[0].mxu0
        %v1137 = vadd.f32 0.0, %v1136
        %v1138 = vpop.f32.mrb[0].mxu0
        %1139 = vmatprep.mubr.bf16.mxu0 %v818
        %1140 = vmatmul.mubr.bf16.gmra.mrb[0].mxu0 %v817
        %v1141 = vpop.f32.mrb[0].mxu0
        %v1142 = vadd.f32 0.0, %v1141
        %v1143 = vpop.f32.mrb[0].mxu0
        %v1144 = vpop.f32.mrb[0].mxu0
        %v1145 = vadd.f32 0.0, %v1144
        %v1146 = vpop.f32.mrb[0].mxu0
        %1147 = vmatprep.mubr.bf16.mxu0 %v820
        %1148 = vmatmul.mubr.bf16.gmra.mrb[0].mxu0 %v819
        %v1149 = vpop.f32.mrb[0].mxu0
        %v1150 = vadd.f32 0.0, %v1149
        %v1151 = vpop.f32.mrb[0].mxu0
        %v1152 = vpop.f32.mrb[0].mxu0
        %v1153 = vadd.f32 0.0, %v1152
        %v1154 = vpop.f32.mrb[0].mxu0
        %1155 = vmatprep.mubr.bf16.mxu0 %v822
        %1156 = vmatmul.mubr.bf16.gmra.mrb[0].mxu0 %v821
        %v1157 = vpop.f32.mrb[0].mxu0
        %v1158 = vadd.f32 0.0, %v1157
        %v1159 = vpop.f32.mrb[0].mxu0
        %v1160 = vpop.f32.mrb[0].mxu0
        %v1161 = vadd.f32 0.0, %v1160
        %v1162 = vpop.f32.mrb[0].mxu0
        %1163 = vmatprep.mubr.bf16.mxu0 %v824
        %1164 = vmatmul.mubr.bf16.gmra.mrb[0].mxu0 %v823
        %v1165 = vpop.f32.mrb[0].mxu0
        %v1166 = vadd.f32 0.0, %v1165
        %v1167 = vpop.f32.mrb[0].mxu0
        %v1168 = vpop.f32.mrb[0].mxu0
        %v1169 = vadd.f32 0.0, %v1168
        %v1170 = vpop.f32.mrb[0].mxu0
        %1171 = vmatprep.mubr.bf16.mxu0 %v826
        %1172 = vmatmul.mubr.bf16.gmra.mrb[0].mxu0 %v825
        %v1173 = vpop.f32.mrb[0].mxu0
        %v1174 = vadd.f32 0.0, %v1173
        %v1175 = vpop.f32.mrb[0].mxu0
        %v1176 = vpop.f32.mrb[0].mxu0
        %v1177 = vadd.f32 0.0, %v1176
        %v1178 = vpop.f32.mrb[0].mxu0
        %1179 = vmatprep.mubr.bf16.mxu0 %v828
        %1180 = vmatmul.mubr.bf16.gmra.mrb[0].mxu0 %v827
        %v1181 = vpop.f32.mrb[0].mxu0
        %v1182 = vadd.f32 0.0, %v1181
        %v1183 = vpop.f32.mrb[0].mxu0
        %v1184 = vpop.f32.mrb[0].mxu0
        %v1185 = vadd.f32 0.0, %v1184
        %v1186 = vpop.f32.mrb[0].mxu0
        %1187 = vmatprep.mubr.bf16.mxu0 %v830
        %1188 = vmatmul.mubr.bf16.gmra.mrb[0].mxu0 %v829
        %v1189 = vpop.f32.mrb[0].mxu0
        %v1190 = vadd.f32 0.0, %v1189
        %v1191 = vpop.f32.mrb[0].mxu0
        %v1192 = vpop.f32.mrb[0].mxu0
        %v1193 = vadd.f32 0.0, %v1192
        %v1194 = vpop.f32.mrb[0].mxu0
        %1195 = vmatprep.mubr.bf16.mxu0 %v832
        %1196 = vmatmul.mubr.bf16.gmra.mrb[0].mxu0 %v831
        %v1197 = vpop.f32.mrb[0].mxu0
        %v1198 = vadd.f32 0.0, %v1197
        %v1199 = vpop.f32.mrb[0].mxu0
        %v1200 = vpop.f32.mrb[0].mxu0
        %v1201 = vadd.f32 0.0, %v1200
        %v1202 = vpop.f32.mrb[0].mxu0
        %1203 = vmatprep.mubr.bf16.mxu0 %v834
        %1204 = vmatmul.mubr.bf16.gmra.mrb[0].mxu0 %v833
        %v1205 = vpop.f32.mrb[0].mxu0
        %v1206 = vadd.f32 0.0, %v1205
        %v1207 = vpop.f32.mrb[0].mxu0
        %v1208 = vpop.f32.mrb[0].mxu0
        %v1209 = vadd.f32 0.0, %v1208
        %v1210 = vpop.f32.mrb[0].mxu0
        %1211 = vmatprep.mubr.bf16.mxu0 %v836
        %1212 = vmatmul.mubr.bf16.gmra.mrb[0].mxu0 %v835
        %v1213 = vpop.f32.mrb[0].mxu0
        %v1214 = vadd.f32 0.0, %v1213
        %v1215 = vpop.f32.mrb[0].mxu0
        %v1216 = vpop.f32.mrb[0].mxu0
        %v1217 = vadd.f32 0.0, %v1216
        %v1218 = vpop.f32.mrb[0].mxu0
        %1219 = vmatprep.mubr.bf16.mxu0 %v838
        %1220 = vmatmul.mubr.bf16.gmra.mrb[0].mxu0 %v837
        %v1221 = vpop.f32.mrb[0].mxu0
        %v1222 = vadd.f32 0.0, %v1221
        %v1223 = vpop.f32.mrb[0].mxu0
        %v1224 = vpop.f32.mrb[0].mxu0
        %v1225 = vadd.f32 0.0, %v1224
        %v1226 = vpop.f32.mrb[0].mxu0
        %1227 = vmatprep.mubr.bf16.mxu0 %v840
        %1228 = vmatmul.mubr.bf16.gmra.mrb[0].mxu0 %v839
        %v1229 = vpop.f32.mrb[0].mxu0
        %v1230 = vadd.f32 0.0, %v1229
        %v1231 = vpop.f32.mrb[0].mxu0
        %v1232 = vpop.f32.mrb[0].mxu0
        %v1233 = vadd.f32 0.0, %v1232
        %v1234 = vpop.f32.mrb[0].mxu0
        %1235 = vmatprep.mubr.bf16.mxu0 %v842
        %1236 = vmatmul.mubr.bf16.gmra.mrb[0].mxu0 %v841
        %v1237 = vpop.f32.mrb[0].mxu0
        %v1238 = vadd.f32 0.0, %v1237
        %v1239 = vpop.f32.mrb[0].mxu0
        %v1240 = vpop.f32.mrb[0].mxu0
        %v1241 = vadd.f32 0.0, %v1240
        %v1242 = vpop.f32.mrb[0].mxu0
        %1243 = vmatprep.mubr.bf16.mxu0 %v844
        %1244 = vmatmul.mubr.bf16.gmra.mrb[0].mxu0 %v843
        %v1245 = vpop.f32.mrb[0].mxu0
        %v1246 = vadd.f32 0.0, %v1245
        %v1247 = vpop.f32.mrb[0].mxu0
        %v1248 = vpop.f32.mrb[0].mxu0
        %v1249 = vadd.f32 0.0, %v1248
        %v1250 = vpop.f32.mrb[0].mxu0
        %1251 = vmatprep.mubr.bf16.mxu0 %v846
        %1252 = vmatmul.mubr.bf16.gmra.mrb[0].mxu0 %v845
        %v1253 = vpop.f32.mrb[0].mxu0
        %v1254 = vadd.f32 0.0, %v1253
        %v1255 = vpop.f32.mrb[0].mxu0
        %v1256 = vpop.f32.mrb[0].mxu0
        %v1257 = vadd.f32 0.0, %v1256
        %v1258 = vpop.f32.mrb[0].mxu0
        %1259 = vmatprep.mubr.bf16.mxu0 %v848
        %1260 = vmatmul.mubr.bf16.gmra.mrb[0].mxu0 %v847
        %v1261 = vpop.f32.mrb[0].mxu0
        %v1262 = vadd.f32 0.0, %v1261
        %v1263 = vpop.f32.mrb[0].mxu0
        %v1264 = vpop.f32.mrb[0].mxu0
        %v1265 = vadd.f32 0.0, %v1264
        %v1266 = vpop.f32.mrb[0].mxu0
        %1267 = vmatprep.mubr.bf16.mxu0 %v850
        %1268 = vmatmul.mubr.bf16.gmra.mrb[0].mxu0 %v849
        %v1269 = vpop.f32.mrb[0].mxu0
        %v1270 = vadd.f32 0.0, %v1269
        %v1271 = vpop.f32.mrb[0].mxu0
        %v1272 = vpop.f32.mrb[0].mxu0
        %v1273 = vadd.f32 0.0, %v1272
        %v1274 = vpop.f32.mrb[0].mxu0
        %1275 = vmatprep.mubr.bf16.mxu0 %v852
        %1276 = vmatmul.mubr.bf16.gmra.mrb[0].mxu0 %v851
        %v1277 = vpop.f32.mrb[0].mxu0
        %v1278 = vadd.f32 0.0, %v1277
        %v1279 = vpop.f32.mrb[0].mxu0
        %v1280 = vpop.f32.mrb[0].mxu0
        %v1281 = vadd.f32 0.0, %v1280
        %v1282 = vpop.f32.mrb[0].mxu0
        %1283 = vmatprep.mubr.bf16.mxu0 %v854
        %1284 = vmatmul.mubr.bf16.gmra.mrb[0].mxu0 %v853
        %v1285 = vpop.f32.mrb[0].mxu0
        %v1286 = vadd.f32 0.0, %v1285
        %v1287 = vpop.f32.mrb[0].mxu0
        %v1288 = vpop.f32.mrb[0].mxu0
        %v1289 = vadd.f32 0.0, %v1288
        %v1290 = vpop.f32.mrb[0].mxu0
        %1291 = vmatprep.mubr.bf16.mxu0 %v856
        %1292 = vmatmul.mubr.bf16.gmra.mrb[0].mxu0 %v855
        %v1293 = vpop.f32.mrb[0].mxu0
        %v1294 = vadd.f32 0.0, %v1293
        %v1295 = vpop.f32.mrb[0].mxu0
        %v1296 = vpop.f32.mrb[0].mxu0
        %v1297 = vadd.f32 0.0, %v1296
        %v1298 = vpop.f32.mrb[0].mxu0
        %1299 = vmatprep.mubr.bf16.mxu0 %v858
        %1300 = vmatmul.mubr.bf16.gmra.mrb[0].mxu0 %v857
        %v1301 = vpop.f32.mrb[0].mxu0
        %v1302 = vadd.f32 0.0, %v1301
        %v1303 = vpop.f32.mrb[0].mxu0
        %v1304 = vpop.f32.mrb[0].mxu0
        %v1305 = vadd.f32 0.0, %v1304
        %v1306 = vpop.f32.mrb[0].mxu0
        %1307 = vdwg.mxu0
        %v1308 = vld [vmem:[%s295] sm:$0xff]
        %v1309 = vld [vmem:[%s295 + $0x8] sm:$0xff]
        %v1310 = vld [vmem:[%s295 + $0x10] sm:$0xff]
        %v1311 = vld [vmem:[%s295 + $0x18] sm:$0xff]
        %v1312 = vld [vmem:[%s295 + $0x20] sm:$0xff]
        %v1313 = vld [vmem:[%s295 + $0x28] sm:$0xff]
        %v1314 = vld [vmem:[%s295 + $0x30] sm:$0xff]
        %v1315 = vld [vmem:[%s295 + $0x38] sm:$0xff]
        %v1316 = vmul.f32 %v1054, %v1308
        %v1317 = vmul.f32 %v1057, %v1309
        %v1318 = vmul.f32 %v1062, %v1310
        %v1319 = vmul.f32 %v1065, %v1311
        %v1320 = vmul.f32 %v1070, %v1312
        %v1321 = vmul.f32 %v1073, %v1313
        %v1322 = vmul.f32 %v1078, %v1314
        %v1323 = vmul.f32 %v1081, %v1315
        %v1324 = vadd.f32 %v1054, %v1086
        %v1325 = vadd.f32 %v1057, %v1089
        %v1326 = vadd.f32 %v1062, %v1094
        %v1327 = vadd.f32 %v1065, %v1097
        %v1328 = vadd.f32 %v1070, %v1102
        %v1329 = vadd.f32 %v1073, %v1105
        %v1330 = vadd.f32 %v1078, %v1110
        %v1331 = vadd.f32 %v1081, %v1113
        %v1332 = vmax.f32 %v1054, %v1086
        %v1333 = vmax.f32 %v1057, %v1089
        %v1334 = vmax.f32 %v1062, %v1094
        %v1335 = vmax.f32 %v1065, %v1097
        %v1336 = vmax.f32 %v1070, %v1102
        %v1337 = vmax.f32 %v1073, %v1105
        %v1338 = vmax.f32 %v1078, %v1110
        %v1339 = vmax.f32 %v1081, %v1113
        %v1340 = vld [vmem:[%s295 + $0x40] sm:$0xff]
        %v1341 = vld [vmem:[%s295 + $0x48] sm:$0xff]
        %v1342 = vld [vmem:[%s295 + $0x50] sm:$0xff]
        %v1343 = vld [vmem:[%s295 + $0x58] sm:$0xff]
        %v1344 = vld [vmem:[%s295 + $0x60] sm:$0xff]
        %v1345 = vld [vmem:[%s295 + $0x68] sm:$0xff]
        %v1346 = vld [vmem:[%s295 + $0x70] sm:$0xff]
        %v1347 = vld [vmem:[%s295 + $0x78] sm:$0xff]
        %v1348 = vmul.f32 %v1086, %v1340
        %v1349 = vmul.f32 %v1089, %v1341
        %v1350 = vmul.f32 %v1094, %v1342
        %v1351 = vmul.f32 %v1097, %v1343
        %v1352 = vmul.f32 %v1102, %v1344
        %v1353 = vmul.f32 %v1105, %v1345
        %v1354 = vmul.f32 %v1110, %v1346
        %v1355 = vmul.f32 %v1113, %v1347
        %v1356 = vadd.f32 %v1316, %v1348
        %v1357 = vadd.f32 %v1317, %v1349
        %v1358 = vadd.f32 %v1318, %v1350
        %v1359 = vadd.f32 %v1319, %v1351
        %v1360 = vadd.f32 %v1320, %v1352
        %v1361 = vadd.f32 %v1321, %v1353
        %v1362 = vadd.f32 %v1322, %v1354
        %v1363 = vadd.f32 %v1323, %v1355
        %v1364 = vadd.f32 %v1324, %v1118
        %v1365 = vadd.f32 %v1325, %v1121
        %v1366 = vadd.f32 %v1326, %v1126
        %v1367 = vadd.f32 %v1327, %v1129
        %v1368 = vadd.f32 %v1328, %v1134
        %v1369 = vadd.f32 %v1329, %v1137
        %v1370 = vadd.f32 %v1330, %v1142
        %v1371 = vadd.f32 %v1331, %v1145
        %v1372 = vmax.f32 %v1332, %v1118
        %v1373 = vmax.f32 %v1333, %v1121
        %v1374 = vmax.f32 %v1334, %v1126
        %v1375 = vmax.f32 %v1335, %v1129
        %v1376 = vmax.f32 %v1336, %v1134
        %v1377 = vmax.f32 %v1337, %v1137
        %v1378 = vmax.f32 %v1338, %v1142
        %v1379 = vmax.f32 %v1339, %v1145
        %v1380 = vld [vmem:[%s295 + $0x80] sm:$0xff]
        %v1381 = vld [vmem:[%s295 + $0x88] sm:$0xff]
        %v1382 = vld [vmem:[%s295 + $0x90] sm:$0xff]
        %v1383 = vld [vmem:[%s295 + $0x98] sm:$0xff]
        %v1384 = vld [vmem:[%s295 + $0xa0] sm:$0xff]
        %v1385 = vld [vmem:[%s295 + $0xa8] sm:$0xff]
        %v1386 = vld [vmem:[%s295 + $0xb0] sm:$0xff]
        %v1387 = vld [vmem:[%s295 + $0xb8] sm:$0xff]
        %v1388 = vmul.f32 %v1118, %v1380
        %v1389 = vmul.f32 %v1121, %v1381
        %v1390 = vmul.f32 %v1126, %v1382
        %v1391 = vmul.f32 %v1129, %v1383
        %v1392 = vmul.f32 %v1134, %v1384
        %v1393 = vmul.f32 %v1137, %v1385
        %v1394 = vmul.f32 %v1142, %v1386
        %v1395 = vmul.f32 %v1145, %v1387
        %v1396 = vadd.f32 %v1356, %v1388
        %v1397 = vadd.f32 %v1357, %v1389
        %v1398 = vadd.f32 %v1358, %v1390
        %v1399 = vadd.f32 %v1359, %v1391
        %v1400 = vadd.f32 %v1360, %v1392
        %v1401 = vadd.f32 %v1361, %v1393
        %v1402 = vadd.f32 %v1362, %v1394
        %v1403 = vadd.f32 %v1363, %v1395
        %v1404 = vadd.f32 %v1364, %v1150
        %v1405 = vadd.f32 %v1365, %v1153
        %v1406 = vadd.f32 %v1366, %v1158
        %v1407 = vadd.f32 %v1367, %v1161
        %v1408 = vadd.f32 %v1368, %v1166
        %v1409 = vadd.f32 %v1369, %v1169
        %v1410 = vadd.f32 %v1370, %v1174
        %v1411 = vadd.f32 %v1371, %v1177
        %v1412 = vmax.f32 %v1372, %v1150
        %v1413 = vmax.f32 %v1373, %v1153
        %v1414 = vmax.f32 %v1374, %v1158
        %v1415 = vmax.f32 %v1375, %v1161
        %v1416 = vmax.f32 %v1376, %v1166
        %v1417 = vmax.f32 %v1377, %v1169
        %v1418 = vmax.f32 %v1378, %v1174
        %v1419 = vmax.f32 %v1379, %v1177
        %v1420 = vld [vmem:[%s295 + $0xc0] sm:$0xff]
        %v1421 = vld [vmem:[%s295 + $0xc8] sm:$0xff]
        %v1422 = vld [vmem:[%s295 + $0xd0] sm:$0xff]
        %v1423 = vld [vmem:[%s295 + $0xd8] sm:$0xff]
        %v1424 = vld [vmem:[%s295 + $0xe0] sm:$0xff]
        %v1425 = vld [vmem:[%s295 + $0xe8] sm:$0xff]
        %v1426 = vld [vmem:[%s295 + $0xf0] sm:$0xff]
        %v1427 = vld [vmem:[%s295 + $0xf8] sm:$0xff]
        %v1428 = vmul.f32 %v1150, %v1420
        %v1429 = vmul.f32 %v1153, %v1421
        %v1430 = vmul.f32 %v1158, %v1422
        %v1431 = vmul.f32 %v1161, %v1423
        %v1432 = vmul.f32 %v1166, %v1424
        %v1433 = vmul.f32 %v1169, %v1425
        %v1434 = vmul.f32 %v1174, %v1426
        %v1435 = vmul.f32 %v1177, %v1427
        %v1436 = vadd.f32 %v1396, %v1428
        %v1437 = vadd.f32 %v1397, %v1429
        %v1438 = vadd.f32 %v1398, %v1430
        %v1439 = vadd.f32 %v1399, %v1431
        %v1440 = vadd.f32 %v1400, %v1432
        %v1441 = vadd.f32 %v1401, %v1433
        %v1442 = vadd.f32 %v1402, %v1434
        %v1443 = vadd.f32 %v1403, %v1435
        %v1444 = vadd.f32 %v1404, %v1182
        %v1445 = vadd.f32 %v1405, %v1185
        %v1446 = vadd.f32 %v1406, %v1190
        %v1447 = vadd.f32 %v1407, %v1193
        %v1448 = vadd.f32 %v1408, %v1198
        %v1449 = vadd.f32 %v1409, %v1201
        %v1450 = vadd.f32 %v1410, %v1206
        %v1451 = vadd.f32 %v1411, %v1209
        %v1452 = vmax.f32 %v1412, %v1182
        %v1453 = vmax.f32 %v1413, %v1185
        %v1454 = vmax.f32 %v1414, %v1190
        %v1455 = vmax.f32 %v1415, %v1193
        %v1456 = vmax.f32 %v1416, %v1198
        %v1457 = vmax.f32 %v1417, %v1201
        %v1458 = vmax.f32 %v1418, %v1206
        %v1459 = vmax.f32 %v1419, %v1209
        %v1460 = vld [vmem:[%s295 + $0x100] sm:$0xff]
        %v1461 = vld [vmem:[%s295 + $0x108] sm:$0xff]
        %v1462 = vld [vmem:[%s295 + $0x110] sm:$0xff]
        %v1463 = vld [vmem:[%s295 + $0x118] sm:$0xff]
        %v1464 = vld [vmem:[%s295 + $0x120] sm:$0xff]
        %v1465 = vld [vmem:[%s295 + $0x128] sm:$0xff]
        %v1466 = vld [vmem:[%s295 + $0x130] sm:$0xff]
        %v1467 = vld [vmem:[%s295 + $0x138] sm:$0xff]
        %v1468 = vmul.f32 %v1182, %v1460
        %v1469 = vmul.f32 %v1185, %v1461
        %v1470 = vmul.f32 %v1190, %v1462
        %v1471 = vmul.f32 %v1193, %v1463
        %v1472 = vmul.f32 %v1198, %v1464
        %v1473 = vmul.f32 %v1201, %v1465
        %v1474 = vmul.f32 %v1206, %v1466
        %v1475 = vmul.f32 %v1209, %v1467
        %v1476 = vadd.f32 %v1436, %v1468
        %v1477 = vadd.f32 %v1437, %v1469
        %v1478 = vadd.f32 %v1438, %v1470
        %v1479 = vadd.f32 %v1439, %v1471
        %v1480 = vadd.f32 %v1440, %v1472
        %v1481 = vadd.f32 %v1441, %v1473
        %v1482 = vadd.f32 %v1442, %v1474
        %v1483 = vadd.f32 %v1443, %v1475
        %v1484 = vadd.f32 %v1444, %v1214
        %v1485 = vadd.f32 %v1445, %v1217
        %v1486 = vadd.f32 %v1446, %v1222
        %v1487 = vadd.f32 %v1447, %v1225
        %v1488 = vadd.f32 %v1448, %v1230
        %v1489 = vadd.f32 %v1449, %v1233
        %v1490 = vadd.f32 %v1450, %v1238
        %v1491 = vadd.f32 %v1451, %v1241
        %v1492 = vmax.f32 %v1452, %v1214
        %v1493 = vmax.f32 %v1453, %v1217
        %v1494 = vmax.f32 %v1454, %v1222
        %v1495 = vmax.f32 %v1455, %v1225
        %v1496 = vmax.f32 %v1456, %v1230
        %v1497 = vmax.f32 %v1457, %v1233
        %v1498 = vmax.f32 %v1458, %v1238
        %v1499 = vmax.f32 %v1459, %v1241
        %v1500 = vld [vmem:[%s295 + $0x140] sm:$0xff]
        %v1501 = vld [vmem:[%s295 + $0x148] sm:$0xff]
        %v1502 = vld [vmem:[%s295 + $0x150] sm:$0xff]
        %v1503 = vld [vmem:[%s295 + $0x158] sm:$0xff]
        %v1504 = vld [vmem:[%s295 + $0x160] sm:$0xff]
        %v1505 = vld [vmem:[%s295 + $0x168] sm:$0xff]
        %v1506 = vld [vmem:[%s295 + $0x170] sm:$0xff]
        %v1507 = vld [vmem:[%s295 + $0x178] sm:$0xff]
        %v1508 = vmul.f32 %v1214, %v1500
        %v1509 = vmul.f32 %v1217, %v1501
        %v1510 = vmul.f32 %v1222, %v1502
        %v1511 = vmul.f32 %v1225, %v1503
        %v1512 = vmul.f32 %v1230, %v1504
        %v1513 = vmul.f32 %v1233, %v1505
        %v1514 = vmul.f32 %v1238, %v1506
        %v1515 = vmul.f32 %v1241, %v1507
        %v1516 = vadd.f32 %v1476, %v1508
        %v1517 = vadd.f32 %v1477, %v1509
        %v1518 = vadd.f32 %v1478, %v1510
        %v1519 = vadd.f32 %v1479, %v1511
        %v1520 = vadd.f32 %v1480, %v1512
        %v1521 = vadd.f32 %v1481, %v1513
        %v1522 = vadd.f32 %v1482, %v1514
        %v1523 = vadd.f32 %v1483, %v1515
        %v1524 = vadd.f32 %v1484, %v1246
        %v1525 = vadd.f32 %v1485, %v1249
        %v1526 = vadd.f32 %v1486, %v1254
        %v1527 = vadd.f32 %v1487, %v1257
        %v1528 = vadd.f32 %v1488, %v1262
        %v1529 = vadd.f32 %v1489, %v1265
        %v1530 = vadd.f32 %v1490, %v1270
        %v1531 = vadd.f32 %v1491, %v1273
        %v1532 = vmax.f32 %v1492, %v1246
        %v1533 = vmax.f32 %v1493, %v1249
        %v1534 = vmax.f32 %v1494, %v1254
        %v1535 = vmax.f32 %v1495, %v1257
        %v1536 = vmax.f32 %v1496, %v1262
        %v1537 = vmax.f32 %v1497, %v1265
        %v1538 = vmax.f32 %v1498, %v1270
        %v1539 = vmax.f32 %v1499, %v1273
        %v1540 = vld [vmem:[%s295 + $0x180] sm:$0xff]
        %v1541 = vld [vmem:[%s295 + $0x188] sm:$0xff]
        %v1542 = vld [vmem:[%s295 + $0x190] sm:$0xff]
        %v1543 = vld [vmem:[%s295 + $0x198] sm:$0xff]
        %v1544 = vld [vmem:[%s295 + $0x1a0] sm:$0xff]
        %v1545 = vld [vmem:[%s295 + $0x1a8] sm:$0xff]
        %v1546 = vld [vmem:[%s295 + $0x1b0] sm:$0xff]
        %v1547 = vld [vmem:[%s295 + $0x1b8] sm:$0xff]
        %v1548 = vmul.f32 %v1246, %v1540
        %v1549 = vmul.f32 %v1249, %v1541
        %v1550 = vmul.f32 %v1254, %v1542
        %v1551 = vmul.f32 %v1257, %v1543
        %v1552 = vmul.f32 %v1262, %v1544
        %v1553 = vmul.f32 %v1265, %v1545
        %v1554 = vmul.f32 %v1270, %v1546
        %v1555 = vmul.f32 %v1273, %v1547
        %v1556 = vadd.f32 %v1516, %v1548
        %v1557 = vadd.f32 %v1517, %v1549
        %v1558 = vadd.f32 %v1518, %v1550
        %v1559 = vadd.f32 %v1519, %v1551
        %v1560 = vadd.f32 %v1520, %v1552
        %v1561 = vadd.f32 %v1521, %v1553
        %v1562 = vadd.f32 %v1522, %v1554
        %v1563 = vadd.f32 %v1523, %v1555
        %v1564 = vadd.f32 %v1524, %v1278
        %v1565 = vadd.f32 %v1525, %v1281
        %v1566 = vadd.f32 %v1526, %v1286
        %v1567 = vadd.f32 %v1527, %v1289
        %v1568 = vadd.f32 %v1528, %v1294
        %v1569 = vadd.f32 %v1529, %v1297
        %v1570 = vadd.f32 %v1530, %v1302
        %v1571 = vadd.f32 %v1531, %v1305
        %v1572 = vmax.f32 %v1532, %v1278
        %v1573 = vmax.f32 %v1533, %v1281
        %v1574 = vmax.f32 %v1534, %v1286
        %v1575 = vmax.f32 %v1535, %v1289
        %v1576 = vmax.f32 %v1536, %v1294
        %v1577 = vmax.f32 %v1537, %v1297
        %v1578 = vmax.f32 %v1538, %v1302
        %v1579 = vmax.f32 %v1539, %v1305
        %v1580 = vld [vmem:[%s295 + $0x1c0] sm:$0xff]
        %v1581 = vld [vmem:[%s295 + $0x1c8] sm:$0xff]
        %v1582 = vld [vmem:[%s295 + $0x1d0] sm:$0xff]
        %v1583 = vld [vmem:[%s295 + $0x1d8] sm:$0xff]
        %v1584 = vld [vmem:[%s295 + $0x1e0] sm:$0xff]
        %v1585 = vld [vmem:[%s295 + $0x1e8] sm:$0xff]
        %v1586 = vld [vmem:[%s295 + $0x1f0] sm:$0xff]
        %v1587 = vld [vmem:[%s295 + $0x1f8] sm:$0xff]
        %v1588 = vmul.f32 %v1278, %v1580
        %v1589 = vmul.f32 %v1281, %v1581
        %v1590 = vmul.f32 %v1286, %v1582
        %v1591 = vmul.f32 %v1289, %v1583
        %v1592 = vmul.f32 %v1294, %v1584
        %v1593 = vmul.f32 %v1297, %v1585
        %v1594 = vmul.f32 %v1302, %v1586
        %v1595 = vmul.f32 %v1305, %v1587
        %v1596 = vadd.f32 %v1556, %v1588
        %v1597 = vadd.f32 %v1557, %v1589
        %v1598 = vadd.f32 %v1558, %v1590
        %v1599 = vadd.f32 %v1559, %v1591
        %v1600 = vadd.f32 %v1560, %v1592
        %v1601 = vadd.f32 %v1561, %v1593
        %v1602 = vadd.f32 %v1562, %v1594
        %v1603 = vadd.f32 %v1563, %v1595
        %v1604 = vmul.f32 %v1564, 0.125
        %v1605 = vmul.f32 %v1565, 0.125
        %v1606 = vmul.f32 %v1566, 0.125
        %v1607 = vmul.f32 %v1567, 0.125
        %v1608 = vmul.f32 %v1568, 0.125
        %v1609 = vmul.f32 %v1569, 0.125
        %v1610 = vmul.f32 %v1570, 0.125
        %v1611 = vmul.f32 %v1571, 0.125
        %v1612 = vadd.f32 %v1604, %v477
        %v1613 = vadd.f32 %v1605, %v480
        %v1614 = vadd.f32 %v1606, %v485
        %v1615 = vadd.f32 %v1607, %v488
        %v1616 = vadd.f32 %v1608, %v493
        %v1617 = vadd.f32 %v1609, %v496
        %v1618 = vadd.f32 %v1610, %v501
        %v1619 = vadd.f32 %v1611, %v504
        %v1620 = vadd.f32 %v1572, %v477
        %v1621 = vadd.f32 %v1573, %v480
        %v1622 = vadd.f32 %v1574, %v485
        %v1623 = vadd.f32 %v1575, %v488
        %v1624 = vadd.f32 %v1576, %v493
        %v1625 = vadd.f32 %v1577, %v496
        %v1626 = vadd.f32 %v1578, %v501
        %v1627 = vadd.f32 %v1579, %v504
        %v1628 = vmul.f32 %v348, %v477
        %v1629 = vmul.f32 %v349, %v480
        %v1630 = vmul.f32 %v350, %v485
        %v1631 = vmul.f32 %v351, %v488
        %v1632 = vmul.f32 %v352, %v493
        %v1633 = vmul.f32 %v353, %v496
        %v1634 = vmul.f32 %v354, %v501
        %v1635 = vmul.f32 %v355, %v504
        %v1636 = vadd.f32 %v1596, %v1628
        %v1637 = vadd.f32 %v1597, %v1629
        %v1638 = vadd.f32 %v1598, %v1630
        %v1639 = vadd.f32 %v1599, %v1631
        %v1640 = vadd.f32 %v1600, %v1632
        %v1641 = vadd.f32 %v1601, %v1633
        %v1642 = vadd.f32 %v1602, %v1634
        %v1643 = vadd.f32 %v1603, %v1635
        %v1644 = vld [vmem:[#allocation8 + $0xc0] sm:$0xf]
        %v1645 = vld [vmem:[#allocation8 + $0xc4] sm:$0xf]
        %v1646 = vld [vmem:[#allocation8 + $0xc8] sm:$0xf]
        %v1647 = vld [vmem:[#allocation8 + $0xcc] sm:$0xf]
        %v1648 = vld [vmem:[#allocation8 + $0xd0] sm:$0xf]
        %v1649 = vld [vmem:[#allocation8 + $0xd4] sm:$0xf]
        %v1650 = vld [vmem:[#allocation8 + $0xd8] sm:$0xf]
        %v1651 = vld [vmem:[#allocation8 + $0xdc] sm:$0xf]
        %v1652 = vld [vmem:[#allocation8 + $0xe0] sm:$0xf]
        %v1653 = vld [vmem:[#allocation8 + $0xe4] sm:$0xf]
        %v1654 = vld [vmem:[#allocation8 + $0xe8] sm:$0xf]
        %v1655 = vld [vmem:[#allocation8 + $0xec] sm:$0xf]
        %v1656 = vld [vmem:[#allocation8 + $0xf0] sm:$0xf]
        %v1657 = vld [vmem:[#allocation8 + $0xf4] sm:$0xf]
        %v1658 = vld [vmem:[#allocation8 + $0xf8] sm:$0xf]
        %v1659 = vld [vmem:[#allocation8 + $0xfc] sm:$0xf]
        %v1660 = vpack.c.bf16 %v1613, %v1612
        %v1661 = vpack.c.bf16 %v1615, %v1614
        %v1662 = vpack.c.bf16 %v1617, %v1616
        %v1663 = vpack.c.bf16 %v1619, %v1618
        %v1664 = vld [vmem:[#allocation8 + $0x100] sm:$0xf]
        %v1665 = vld [vmem:[#allocation8 + $0x104] sm:$0xf]
        %v1666 = vld [vmem:[#allocation8 + $0x108] sm:$0xf]
        %v1667 = vld [vmem:[#allocation8 + $0x10c] sm:$0xf]
        %v1668 = vld [vmem:[#allocation8 + $0x110] sm:$0xf]
        %v1669 = vld [vmem:[#allocation8 + $0x114] sm:$0xf]
        %v1670 = vld [vmem:[#allocation8 + $0x118] sm:$0xf]
        %v1671 = vld [vmem:[#allocation8 + $0x11c] sm:$0xf]
        %v1672 = vld [vmem:[#allocation8 + $0x120] sm:$0xf]
        %v1673 = vld [vmem:[#allocation8 + $0x124] sm:$0xf]
        %v1674 = vld [vmem:[#allocation8 + $0x128] sm:$0xf]
        %v1675 = vld [vmem:[#allocation8 + $0x12c] sm:$0xf]
        %v1676 = vld [vmem:[#allocation8 + $0x130] sm:$0xf]
        %v1677 = vld [vmem:[#allocation8 + $0x134] sm:$0xf]
        %v1678 = vld [vmem:[#allocation8 + $0x138] sm:$0xf]
        %v1679 = vld [vmem:[#allocation8 + $0x13c] sm:$0xf]
        %v1696 = vunpack.c.l.b16 %v1664
        %v1697 = vunpack.c.l.b16 %v1665
        %v1698 = vunpack.c.l.b16 %v1666
        %v1699 = vunpack.c.l.b16 %v1667
        %v1700 = vunpack.c.l.b16 %v1668
        %v1701 = vunpack.c.l.b16 %v1669
        %v1702 = vunpack.c.l.b16 %v1670
        %v1703 = vunpack.c.l.b16 %v1671
        %v1704 = vunpack.c.l.b16 %v1672
        %v1705 = vunpack.c.l.b16 %v1673
        %v1706 = vunpack.c.l.b16 %v1674
        %v1707 = vunpack.c.l.b16 %v1675
        %v1708 = vunpack.c.l.b16 %v1676
        %v1709 = vunpack.c.l.b16 %v1677
        %v1710 = vunpack.c.l.b16 %v1678
        %v1711 = vunpack.c.l.b16 %v1679
        %v1712 = vpack.c.b16 %v1697, %v1696
        %v1713 = vpack.c.b16 %v1699, %v1698
        %v1714 = vpack.c.b16 %v1701, %v1700
        %v1715 = vpack.c.b16 %v1703, %v1702
        %v1716 = vpack.c.b16 %v1705, %v1704
        %v1717 = vpack.c.b16 %v1707, %v1706
        %v1718 = vpack.c.b16 %v1709, %v1708
        %v1719 = vpack.c.b16 %v1711, %v1710
        %1728 = vmatprep.subr.bf16.mxu0 0
        %1729 = vmatpush1.bf16.msra.mxu0 %v1712
        %1730 = vmatprep.subr.bf16.mxu0 0
        %1731 = vmatpush1.bf16.msra.mxu0 %v1713
        %1732 = vmatprep.subr.bf16.mxu0 0
        %1733 = vmatpush1.bf16.msra.mxu0 %v1714
        %1734 = vmatprep.subr.bf16.mxu0 0
        %1735 = vmatpush1.bf16.msra.mxu0 %v1715
        %1736 = vmatprep.subr.bf16.mxu0 0
        %1737 = vmatpush1.bf16.msra.mxu0 %v1716
        %1738 = vmatprep.subr.bf16.mxu0 0
        %1739 = vmatpush1.bf16.msra.mxu0 %v1717
        %1740 = vmatprep.subr.bf16.mxu0 0
        %1741 = vmatpush1.bf16.msra.mxu0 %v1718
        %1742 = vmatprep.subr.bf16.mxu0 0
        %1743 = vmatpush1.bf16.msra.mxu0 %v1719
        %1744 = vmatprep.subr.bf16.mxu0 0
        %1745 = vmatpush1.bf16.msra.mxu0 0
        %1746 = vmatprep.subr.bf16.mxu0 0
        %1747 = vmatpush1.bf16.msra.mxu0 0
        %1748 = vmatprep.subr.bf16.mxu0 0
        %1749 = vmatpush1.bf16.msra.mxu0 0
        %1750 = vmatprep.subr.bf16.mxu0 0
        %1751 = vmatpush1.bf16.msra.mxu0 0
        %1752 = vmatprep.subr.bf16.mxu0 0
        %1753 = vmatpush1.bf16.msra.mxu0 0
        %1754 = vmatprep.subr.bf16.mxu0 0
        %1755 = vmatpush1.bf16.msra.mxu0 0
        %1756 = vmatprep.subr.bf16.mxu0 0
        %1757 = vmatpush1.bf16.msra.mxu0 0
        %1758 = vmatprep.subr.bf16.mxu0 0
        %1759 = vmatpush1.bf16.msra.mxu0 0
        %1760 = vmatprep.mubr.bf16.mxu0 0
        %1761 = vmatmul.mubr.bf16.gmra.mrb[0].mxu0 %v1660
        %v1762 = vpop.f32.mrb[0].mxu0
        %v1763 = vadd.f32 0.0, %v1762
        %v1764 = vpop.f32.mrb[0].mxu0
        %v1765 = vpop.f32.mrb[0].mxu0
        %v1766 = vadd.f32 0.0, %v1765
        %v1767 = vpop.f32.mrb[0].mxu0
        %1768 = vmatprep.mubr.bf16.mxu0 0
        %1769 = vmatmul.mubr.bf16.gmra.mrb[0].mxu0 %v1661
        %v1770 = vpop.f32.mrb[0].mxu0
        %v1771 = vadd.f32 0.0, %v1770
        %v1772 = vpop.f32.mrb[0].mxu0
        %v1773 = vpop.f32.mrb[0].mxu0
        %v1774 = vadd.f32 0.0, %v1773
        %v1775 = vpop.f32.mrb[0].mxu0
        %1776 = vmatprep.mubr.bf16.mxu0 0
        %1777 = vmatmul.mubr.bf16.gmra.mrb[0].mxu0 %v1662
        %v1778 = vpop.f32.mrb[0].mxu0
        %v1779 = vadd.f32 0.0, %v1778
        %v1780 = vpop.f32.mrb[0].mxu0
        %v1781 = vpop.f32.mrb[0].mxu0
        %v1782 = vadd.f32 0.0, %v1781
        %v1783 = vpop.f32.mrb[0].mxu0
        %1784 = vmatprep.mubr.bf16.mxu0 0
        %1785 = vmatmul.mubr.bf16.gmra.mrb[0].mxu0 %v1663
        %v1786 = vpop.f32.mrb[0].mxu0
        %v1787 = vadd.f32 0.0, %v1786
        %v1788 = vpop.f32.mrb[0].mxu0
        %v1789 = vpop.f32.mrb[0].mxu0
        %v1790 = vadd.f32 0.0, %v1789
        %v1791 = vpop.f32.mrb[0].mxu0
        %1792 = vdwg.mxu0
        %v1809 = vunpack.c.l.b16 %v1644
        %v1810 = vunpack.c.l.b16 %v1645
        %v1811 = vunpack.c.l.b16 %v1646
        %v1812 = vunpack.c.l.b16 %v1647
        %v1813 = vunpack.c.l.b16 %v1648
        %v1814 = vunpack.c.l.b16 %v1649
        %v1815 = vunpack.c.l.b16 %v1650
        %v1816 = vunpack.c.l.b16 %v1651
        %v1817 = vunpack.c.l.b16 %v1652
        %v1818 = vunpack.c.l.b16 %v1653
        %v1819 = vunpack.c.l.b16 %v1654
        %v1820 = vunpack.c.l.b16 %v1655
        %v1821 = vunpack.c.l.b16 %v1656
        %v1822 = vunpack.c.l.b16 %v1657
        %v1823 = vunpack.c.l.b16 %v1658
        %v1824 = vunpack.c.l.b16 %v1659
        %v1825 = vpack.c.b16 %v1810, %v1809
        %v1826 = vpack.c.b16 %v1812, %v1811
        %v1827 = vpack.c.b16 %v1814, %v1813
        %v1828 = vpack.c.b16 %v1816, %v1815
        %v1829 = vpack.c.b16 %v1818, %v1817
        %v1830 = vpack.c.b16 %v1820, %v1819
        %v1831 = vpack.c.b16 %v1822, %v1821
        %v1832 = vpack.c.b16 %v1824, %v1823
        %1841 = vmatprep.subr.bf16.mxu0 0
        %1842 = vmatpush1.bf16.msra.mxu0 %v1825
        %1843 = vmatprep.subr.bf16.mxu0 0
        %1844 = vmatpush1.bf16.msra.mxu0 %v1826
        %1845 = vmatprep.subr.bf16.mxu0 0
        %1846 = vmatpush1.bf16.msra.mxu0 %v1827
        %1847 = vmatprep.subr.bf16.mxu0 0
        %1848 = vmatpush1.bf16.msra.mxu0 %v1828
        %1849 = vmatprep.subr.bf16.mxu0 0
        %1850 = vmatpush1.bf16.msra.mxu0 %v1829
        %1851 = vmatprep.subr.bf16.mxu0 0
        %1852 = vmatpush1.bf16.msra.mxu0 %v1830
        %1853 = vmatprep.subr.bf16.mxu0 0
        %1854 = vmatpush1.bf16.msra.mxu0 %v1831
        %1855 = vmatprep.subr.bf16.mxu0 0
        %1856 = vmatpush1.bf16.msra.mxu0 %v1832
        %1857 = vmatprep.subr.bf16.mxu0 0
        %1858 = vmatpush1.bf16.msra.mxu0 0
        %1859 = vmatprep.subr.bf16.mxu0 0
        %1860 = vmatpush1.bf16.msra.mxu0 0
        %1861 = vmatprep.subr.bf16.mxu0 0
        %1862 = vmatpush1.bf16.msra.mxu0 0
        %1863 = vmatprep.subr.bf16.mxu0 0
        %1864 = vmatpush1.bf16.msra.mxu0 0
        %1865 = vmatprep.subr.bf16.mxu0 0
        %1866 = vmatpush1.bf16.msra.mxu0 0
        %1867 = vmatprep.subr.bf16.mxu0 0
        %1868 = vmatpush1.bf16.msra.mxu0 0
        %1869 = vmatprep.subr.bf16.mxu0 0
        %1870 = vmatpush1.bf16.msra.mxu0 0
        %1871 = vmatprep.subr.bf16.mxu0 0
        %1872 = vmatpush1.bf16.msra.mxu0 0
        %1873 = vmatprep.mubr.bf16.mxu0 0
        %1874 = vmatmul.mubr.bf16.gmra.mrb[0].mxu0 %v374
        %v1875 = vpop.f32.mrb[0].mxu0
        %v1876 = vadd.f32 %v1763, %v1875
        %v1877 = vpop.f32.mrb[0].mxu0
        %v1878 = vpop.f32.mrb[0].mxu0
        %v1879 = vadd.f32 %v1766, %v1878
        %v1880 = vpop.f32.mrb[0].mxu0
        %1881 = vmatprep.mubr.bf16.mxu0 0
        %1882 = vmatmul.mubr.bf16.gmra.mrb[0].mxu0 %v375
        %v1883 = vpop.f32.mrb[0].mxu0
        %v1884 = vadd.f32 %v1771, %v1883
        %v1885 = vpop.f32.mrb[0].mxu0
        %v1886 = vpop.f32.mrb[0].mxu0
        %v1887 = vadd.f32 %v1774, %v1886
        %v1888 = vpop.f32.mrb[0].mxu0
        %1889 = vmatprep.mubr.bf16.mxu0 0
        %1890 = vmatmul.mubr.bf16.gmra.mrb[0].mxu0 %v376
        %v1891 = vpop.f32.mrb[0].mxu0
        %v1892 = vadd.f32 %v1779, %v1891
        %v1893 = vpop.f32.mrb[0].mxu0
        %v1894 = vpop.f32.mrb[0].mxu0
        %v1895 = vadd.f32 %v1782, %v1894
        %v1896 = vpop.f32.mrb[0].mxu0
        %1897 = vmatprep.mubr.bf16.mxu0 0
        %1898 = vmatmul.mubr.bf16.gmra.mrb[0].mxu0 %v377
        %v1899 = vpop.f32.mrb[0].mxu0
        %v1900 = vadd.f32 %v1787, %v1899
        %v1901 = vpop.f32.mrb[0].mxu0
        %v1902 = vpop.f32.mrb[0].mxu0
        %v1903 = vadd.f32 %v1790, %v1902
        %v1904 = vpop.f32.mrb[0].mxu0
        %1905 = vdwg.mxu0
        %v1906 = vpack.c.bf16 %v1621, %v1620
        %v1907 = vpack.c.bf16 %v1623, %v1622
        %v1908 = vpack.c.bf16 %v1625, %v1624
        %v1909 = vpack.c.bf16 %v1627, %v1626
        %v1910 = vld [vmem:[#allocation8 + $0x140] sm:$0xf]
        %v1911 = vld [vmem:[#allocation8 + $0x144] sm:$0xf]
        %v1912 = vld [vmem:[#allocation8 + $0x148] sm:$0xf]
        %v1913 = vld [vmem:[#allocation8 + $0x14c] sm:$0xf]
        %v1914 = vld [vmem:[#allocation8 + $0x150] sm:$0xf]
        %v1915 = vld [vmem:[#allocation8 + $0x154] sm:$0xf]
        %v1916 = vld [vmem:[#allocation8 + $0x158] sm:$0xf]
        %v1917 = vld [vmem:[#allocation8 + $0x15c] sm:$0xf]
        %v1918 = vld [vmem:[#allocation8 + $0x160] sm:$0xf]
        %v1919 = vld [vmem:[#allocation8 + $0x164] sm:$0xf]
        %v1920 = vld [vmem:[#allocation8 + $0x168] sm:$0xf]
        %v1921 = vld [vmem:[#allocation8 + $0x16c] sm:$0xf]
        %v1922 = vld [vmem:[#allocation8 + $0x170] sm:$0xf]
        %v1923 = vld [vmem:[#allocation8 + $0x174] sm:$0xf]
        %v1924 = vld [vmem:[#allocation8 + $0x178] sm:$0xf]
        %v1925 = vld [vmem:[#allocation8 + $0x17c] sm:$0xf]
        %v1942 = vunpack.c.l.b16 %v1910
        %v1943 = vunpack.c.l.b16 %v1911
        %v1944 = vunpack.c.l.b16 %v1912
        %v1945 = vunpack.c.l.b16 %v1913
        %v1946 = vunpack.c.l.b16 %v1914
        %v1947 = vunpack.c.l.b16 %v1915
        %v1948 = vunpack.c.l.b16 %v1916
        %v1949 = vunpack.c.l.b16 %v1917
        %v1950 = vunpack.c.l.b16 %v1918
        %v1951 = vunpack.c.l.b16 %v1919
        %v1952 = vunpack.c.l.b16 %v1920
        %v1953 = vunpack.c.l.b16 %v1921
        %v1954 = vunpack.c.l.b16 %v1922
        %v1955 = vunpack.c.l.b16 %v1923
        %v1956 = vunpack.c.l.b16 %v1924
        %v1957 = vunpack.c.l.b16 %v1925
        %v1958 = vpack.c.b16 %v1943, %v1942
        %v1959 = vpack.c.b16 %v1945, %v1944
        %v1960 = vpack.c.b16 %v1947, %v1946
        %v1961 = vpack.c.b16 %v1949, %v1948
        %v1962 = vpack.c.b16 %v1951, %v1950
        %v1963 = vpack.c.b16 %v1953, %v1952
        %v1964 = vpack.c.b16 %v1955, %v1954
        %v1965 = vpack.c.b16 %v1957, %v1956
        %1974 = vmatprep.subr.bf16.mxu0 0
        %1975 = vmatpush1.bf16.msra.mxu0 %v1958
        %1976 = vmatprep.subr.bf16.mxu0 0
        %1977 = vmatpush1.bf16.msra.mxu0 %v1959
        %1978 = vmatprep.subr.bf16.mxu0 0
        %1979 = vmatpush1.bf16.msra.mxu0 %v1960
        %1980 = vmatprep.subr.bf16.mxu0 0
        %1981 = vmatpush1.bf16.msra.mxu0 %v1961
        %1982 = vmatprep.subr.bf16.mxu0 0
        %1983 = vmatpush1.bf16.msra.mxu0 %v1962
        %1984 = vmatprep.subr.bf16.mxu0 0
        %1985 = vmatpush1.bf16.msra.mxu0 %v1963
        %1986 = vmatprep.subr.bf16.mxu0 0
        %1987 = vmatpush1.bf16.msra.mxu0 %v1964
        %1988 = vmatprep.subr.bf16.mxu0 0
        %1989 = vmatpush1.bf16.msra.mxu0 %v1965
        %1990 = vmatprep.subr.bf16.mxu0 0
        %1991 = vmatpush1.bf16.msra.mxu0 0
        %1992 = vmatprep.subr.bf16.mxu0 0
        %1993 = vmatpush1.bf16.msra.mxu0 0
        %1994 = vmatprep.subr.bf16.mxu0 0
        %1995 = vmatpush1.bf16.msra.mxu0 0
        %1996 = vmatprep.subr.bf16.mxu0 0
        %1997 = vmatpush1.bf16.msra.mxu0 0
        %1998 = vmatprep.subr.bf16.mxu0 0
        %1999 = vmatpush1.bf16.msra.mxu0 0
        %2000 = vmatprep.subr.bf16.mxu0 0
        %2001 = vmatpush1.bf16.msra.mxu0 0
        %2002 = vmatprep.subr.bf16.mxu0 0
        %2003 = vmatpush1.bf16.msra.mxu0 0
        %2004 = vmatprep.subr.bf16.mxu0 0
        %2005 = vmatpush1.bf16.msra.mxu0 0
        %2006 = vmatprep.mubr.bf16.mxu0 0
        %2007 = vmatmul.mubr.bf16.gmra.mrb[0].mxu0 %v1906
        %v2008 = vpop.f32.mrb[0].mxu0
        %v2009 = vadd.f32 0.0, %v2008
        %v2010 = vpop.f32.mrb[0].mxu0
        %v2011 = vpop.f32.mrb[0].mxu0
        %v2012 = vadd.f32 0.0, %v2011
        %v2013 = vpop.f32.mrb[0].mxu0
        %2014 = vmatprep.mubr.bf16.mxu0 0
        %2015 = vmatmul.mubr.bf16.gmra.mrb[0].mxu0 %v1907
        %v2016 = vpop.f32.mrb[0].mxu0
        %v2017 = vadd.f32 0.0, %v2016
        %v2018 = vpop.f32.mrb[0].mxu0
        %v2019 = vpop.f32.mrb[0].mxu0
        %v2020 = vadd.f32 0.0, %v2019
        %v2021 = vpop.f32.mrb[0].mxu0
        %2022 = vmatprep.mubr.bf16.mxu0 0
        %2023 = vmatmul.mubr.bf16.gmra.mrb[0].mxu0 %v1908
        %v2024 = vpop.f32.mrb[0].mxu0
        %v2025 = vadd.f32 0.0, %v2024
        %v2026 = vpop.f32.mrb[0].mxu0
        %v2027 = vpop.f32.mrb[0].mxu0
        %v2028 = vadd.f32 0.0, %v2027
        %v2029 = vpop.f32.mrb[0].mxu0
        %2030 = vmatprep.mubr.bf16.mxu0 0
        %2031 = vmatmul.mubr.bf16.gmra.mrb[0].mxu0 %v1909
        %v2032 = vpop.f32.mrb[0].mxu0
        %v2033 = vadd.f32 0.0, %v2032
        %v2034 = vpop.f32.mrb[0].mxu0
        %v2035 = vpop.f32.mrb[0].mxu0
        %v2036 = vadd.f32 0.0, %v2035
        %v2037 = vpop.f32.mrb[0].mxu0
        %2038 = vdwg.mxu0
        %v2039 = vadd.f32 %v1876, %v2009
        %v2040 = vadd.f32 %v1879, %v2012
        %v2041 = vadd.f32 %v1884, %v2017
        %v2042 = vadd.f32 %v1887, %v2020
        %v2043 = vadd.f32 %v1892, %v2025
        %v2044 = vadd.f32 %v1895, %v2028
        %v2045 = vadd.f32 %v1900, %v2033
        %v2046 = vadd.f32 %v1903, %v2036
        %v2047 = vpack.c.bf16 %v1637, %v1636
        %v2048 = vpack.c.bf16 %v1639, %v1638
        %v2049 = vpack.c.bf16 %v1641, %v1640
        %v2050 = vpack.c.bf16 %v1643, %v1642
        %v2051 = vld [vmem:[#allocation8 + $0x180] sm:$0xf]
        %v2052 = vld [vmem:[#allocation8 + $0x184] sm:$0xf]
        %v2053 = vld [vmem:[#allocation8 + $0x188] sm:$0xf]
        %v2054 = vld [vmem:[#allocation8 + $0x18c] sm:$0xf]
        %v2055 = vld [vmem:[#allocation8 + $0x190] sm:$0xf]
        %v2056 = vld [vmem:[#allocation8 + $0x194] sm:$0xf]
        %v2057 = vld [vmem:[#allocation8 + $0x198] sm:$0xf]
        %v2058 = vld [vmem:[#allocation8 + $0x19c] sm:$0xf]
        %v2059 = vld [vmem:[#allocation8 + $0x1a0] sm:$0xf]
        %v2060 = vld [vmem:[#allocation8 + $0x1a4] sm:$0xf]
        %v2061 = vld [vmem:[#allocation8 + $0x1a8] sm:$0xf]
        %v2062 = vld [vmem:[#allocation8 + $0x1ac] sm:$0xf]
        %v2063 = vld [vmem:[#allocation8 + $0x1b0] sm:$0xf]
        %v2064 = vld [vmem:[#allocation8 + $0x1b4] sm:$0xf]
        %v2065 = vld [vmem:[#allocation8 + $0x1b8] sm:$0xf]
        %v2066 = vld [vmem:[#allocation8 + $0x1bc] sm:$0xf]
        %v2083 = vunpack.c.l.b16 %v2051
        %v2084 = vunpack.c.l.b16 %v2052
        %v2085 = vunpack.c.l.b16 %v2053
        %v2086 = vunpack.c.l.b16 %v2054
        %v2087 = vunpack.c.l.b16 %v2055
        %v2088 = vunpack.c.l.b16 %v2056
        %v2089 = vunpack.c.l.b16 %v2057
        %v2090 = vunpack.c.l.b16 %v2058
        %v2091 = vunpack.c.l.b16 %v2059
        %v2092 = vunpack.c.l.b16 %v2060
        %v2093 = vunpack.c.l.b16 %v2061
        %v2094 = vunpack.c.l.b16 %v2062
        %v2095 = vunpack.c.l.b16 %v2063
        %v2096 = vunpack.c.l.b16 %v2064
        %v2097 = vunpack.c.l.b16 %v2065
        %v2098 = vunpack.c.l.b16 %v2066
        %v2099 = vpack.c.b16 %v2084, %v2083
        %v2100 = vpack.c.b16 %v2086, %v2085
        %v2101 = vpack.c.b16 %v2088, %v2087
        %v2102 = vpack.c.b16 %v2090, %v2089
        %v2103 = vpack.c.b16 %v2092, %v2091
        %v2104 = vpack.c.b16 %v2094, %v2093
        %v2105 = vpack.c.b16 %v2096, %v2095
        %v2106 = vpack.c.b16 %v2098, %v2097
        %2115 = vmatprep.subr.bf16.mxu0 0
        %2116 = vmatpush1.bf16.msra.mxu0 %v2099
        %2117 = vmatprep.subr.bf16.mxu0 0
        %2118 = vmatpush1.bf16.msra.mxu0 %v2100
        %2119 = vmatprep.subr.bf16.mxu0 0
        %2120 = vmatpush1.bf16.msra.mxu0 %v2101
        %2121 = vmatprep.subr.bf16.mxu0 0
        %2122 = vmatpush1.bf16.msra.mxu0 %v2102
        %2123 = vmatprep.subr.bf16.mxu0 0
        %2124 = vmatpush1.bf16.msra.mxu0 %v2103
        %2125 = vmatprep.subr.bf16.mxu0 0
        %2126 = vmatpush1.bf16.msra.mxu0 %v2104
        %2127 = vmatprep.subr.bf16.mxu0 0
        %2128 = vmatpush1.bf16.msra.mxu0 %v2105
        %2129 = vmatprep.subr.bf16.mxu0 0
        %2130 = vmatpush1.bf16.msra.mxu0 %v2106
        %2131 = vmatprep.subr.bf16.mxu0 0
        %2132 = vmatpush1.bf16.msra.mxu0 0
        %2133 = vmatprep.subr.bf16.mxu0 0
        %2134 = vmatpush1.bf16.msra.mxu0 0
        %2135 = vmatprep.subr.bf16.mxu0 0
        %2136 = vmatpush1.bf16.msra.mxu0 0
        %2137 = vmatprep.subr.bf16.mxu0 0
        %2138 = vmatpush1.bf16.msra.mxu0 0
        %2139 = vmatprep.subr.bf16.mxu0 0
        %2140 = vmatpush1.bf16.msra.mxu0 0
        %2141 = vmatprep.subr.bf16.mxu0 0
        %2142 = vmatpush1.bf16.msra.mxu0 0
        %2143 = vmatprep.subr.bf16.mxu0 0
        %2144 = vmatpush1.bf16.msra.mxu0 0
        %2145 = vmatprep.subr.bf16.mxu0 0
        %2146 = vmatpush1.bf16.msra.mxu0 0
        %2147 = vmatprep.mubr.bf16.mxu0 0
        %2148 = vmatmul.mubr.bf16.gmra.mrb[0].mxu0 %v2047
        %v2149 = vpop.f32.mrb[0].mxu0
        %v2150 = vadd.f32 0.0, %v2149
        %v2151 = vpop.f32.mrb[0].mxu0
        %v2152 = vpop.f32.mrb[0].mxu0
        %v2153 = vadd.f32 0.0, %v2152
        %v2154 = vpop.f32.mrb[0].mxu0
        %2155 = vmatprep.mubr.bf16.mxu0 0
        %2156 = vmatmul.mubr.bf16.gmra.mrb[0].mxu0 %v2048
        %v2157 = vpop.f32.mrb[0].mxu0
        %v2158 = vadd.f32 0.0, %v2157
        %v2159 = vpop.f32.mrb[0].mxu0
        %v2160 = vpop.f32.mrb[0].mxu0
        %v2161 = vadd.f32 0.0, %v2160
        %v2162 = vpop.f32.mrb[0].mxu0
        %2163 = vmatprep.mubr.bf16.mxu0 0
        %2164 = vmatmul.mubr.bf16.gmra.mrb[0].mxu0 %v2049
        %v2165 = vpop.f32.mrb[0].mxu0
        %v2166 = vadd.f32 0.0, %v2165
        %v2167 = vpop.f32.mrb[0].mxu0
        %v2168 = vpop.f32.mrb[0].mxu0
        %v2169 = vadd.f32 0.0, %v2168
        %v2170 = vpop.f32.mrb[0].mxu0
        %2171 = vmatprep.mubr.bf16.mxu0 0
        %2172 = vmatmul.mubr.bf16.gmra.mrb[0].mxu0 %v2050
        %v2173 = vpop.f32.mrb[0].mxu0
        %v2174 = vadd.f32 0.0, %v2173
        %v2175 = vpop.f32.mrb[0].mxu0
        %v2176 = vpop.f32.mrb[0].mxu0
        %v2177 = vadd.f32 0.0, %v2176
        %v2178 = vpop.f32.mrb[0].mxu0
        %2179 = vdwg.mxu0
        %v2180 = vadd.f32 %v2039, %v2150
        %v2181 = vadd.f32 %v2040, %v2153
        %v2182 = vadd.f32 %v2041, %v2158
        %v2183 = vadd.f32 %v2042, %v2161
        %v2184 = vadd.f32 %v2043, %v2166
        %v2185 = vadd.f32 %v2044, %v2169
        %v2186 = vadd.f32 %v2045, %v2174
        %v2187 = vadd.f32 %v2046, %v2177
        %v2188 = vmul.f32 %v2180, %v357
        %v2189 = vmul.f32 %v2181, %v358
        %v2190 = vmul.f32 %v2182, %v359
        %v2191 = vmul.f32 %v2183, %v360
        %v2192 = vmul.f32 %v2184, %v361
        %v2193 = vmul.f32 %v2185, %v362
        %v2194 = vmul.f32 %v2186, %v363
        %v2195 = vmul.f32 %v2187, %v364
        %v2196 = vadd.f32 %v2188, %v366
        %v2197 = vadd.f32 %v2189, %v367
        %v2198 = vadd.f32 %v2190, %v368
        %v2199 = vadd.f32 %v2191, %v369
        %v2200 = vadd.f32 %v2192, %v370
        %v2201 = vadd.f32 %v2193, %v371
        %v2202 = vadd.f32 %v2194, %v372
        %v2203 = vadd.f32 %v2195, %v373
        %v2204 = vmax.f32 %v2196, 0.0
        %v2205 = vmax.f32 %v2197, 0.0
        %v2206 = vmax.f32 %v2198, 0.0
        %v2207 = vmax.f32 %v2199, 0.0
        %v2208 = vmax.f32 %v2200, 0.0
        %v2209 = vmax.f32 %v2201, 0.0
        %v2210 = vmax.f32 %v2202, 0.0
        %v2211 = vmax.f32 %v2203, 0.0
        %v2212 = vadd.f32 %v339, %v2204
        %v2213 = vadd.f32 %v340, %v2205
        %v2214 = vadd.f32 %v341, %v2206
        %v2215 = vadd.f32 %v342, %v2207
        %v2216 = vadd.f32 %v343, %v2208
        %v2217 = vadd.f32 %v344, %v2209
        %v2218 = vadd.f32 %v345, %v2210
        %v2219 = vadd.f32 %v346, %v2211
        %2220 = vst [vmem:[%s333] sm:$0xff] %v2212
        %2221 = vst [vmem:[%s333 + $0x8] sm:$0xff] %v2213
        %2222 = vst [vmem:[%s333 + $0x10] sm:$0xff] %v2214
        %2223 = vst [vmem:[%s333 + $0x18] sm:$0xff] %v2215
        %2224 = vst [vmem:[%s333 + $0x20] sm:$0xff] %v2216
        %2225 = vst [vmem:[%s333 + $0x28] sm:$0xff] %v2217
        %2226 = vst [vmem:[%s333 + $0x30] sm:$0xff] %v2218
        %2227 = vst [vmem:[%s333 + $0x38] sm:$0xff] %v2219
        %s2228 = sand.u32 %s132, 1
        %s2229 = scalar_lea.sflag [#allocation4], %s2228
        %s2230 = sand.u32 %s132, 1
        %s2231 = smul.addr %s2230, 64
        %s2232 = scalar_lea.vmem [#allocation10], %s2231
        // Predicated region
        $region53: #{tpu_custom_call.1} parent=35 // pred_check
          %p2233 = pneg %p142
        $region54: #{tpu_custom_call.1} parent=35 // pred_check_branch
          %2235 = sbr.rel (%p2233) target = $region56
        $region55: #{tpu_custom_call.1} parent=35 // pred_region
          %s2236 = smul.u32 8, %s25
          %s2238 = ssub.s32 1024, 1024
          %2239 = vsyncadd %s2229, %s2238
          %s2240 = smul.addr %s2236, 128
          %s2241 = scalar_lea.hbm %s4, %s2240
          %s2242 = sshll.u32 %s2232, 4
          %s2243 = int_to_ptr.vmem [resolvable:$true] %s2242
          %2248 = dma.vmem_to_hbm [thread:$0]  %s2243, 1024, %s2241, %s2229, 128, 128, 8
        $region56: #{tpu_custom_call.1} parent=35 // pred_fallthru
          _
      $region36: #{tpu_custom_call.1} parent=5 // pred_fallthru
        _
      %p2249 = scmp.le.s32.totalorder 2, %s20
      // Predicated region
      $region57: #{tpu_custom_call.1} parent=5 // pred_check
        %p2250 = pneg %p2249
      $region58: #{tpu_custom_call.1} parent=5 // pred_check_branch
        %2252 = sbr.rel (%p2250) target = $region60
      $region59: #{tpu_custom_call.1} parent=5 // pred_region
        %s2253 = ssub.s32 %s20, 2
        // Predicated region
        $region61: #{tpu_custom_call.1} parent=59 // pred_check
          %p2254 = pneg %p148
        $region62: #{tpu_custom_call.1} parent=59 // pred_check_branch
          %2256 = sbr.rel (%p2254) target = $region64
        $region63: #{tpu_custom_call.1} parent=59 // pred_region
          %s2257 = sand.u32 %s133, 1
          %s2258 = scalar_lea.sflag [#allocation4], %s2257
          %s2259 = sand.u32 %s133, 1
          %s2260 = smul.addr %s2259, 64
          %s2261 = scalar_lea.vmem [#allocation10], %s2260
          %2262 = dma.done %s2258, 1024
        $region64: #{tpu_custom_call.1} parent=59 // pred_fallthru
          _
      $region60: #{tpu_custom_call.1} parent=5 // pred_fallthru
        _
    $region6: #{tpu_custom_call.1} parent=1 // loop_footer
      %s24 = sadd.s32 1, %s20
    $region7: #{tpu_custom_call.1} parent=1 // loop_footer_branch
      %19 = sbr.rel target = $region3
    $region8: #{tpu_custom_call.1} parent=1 // loop_exit
      _
    %2263 = vsyncpa [#allocation3], 1
    %s2264 = scalar_lea.sflag [#allocation3], 1
    %2265 = vsyncpa %s2264, 1
    %2266 = vsyncpa [#allocation6], 1
    %s2267 = scalar_lea.sflag [#allocation6], 1
    %2268 = vsyncpa %s2267, 1
    %2269 = vsyncpa [#allocation9], 1
    %2270 = vsyncpa [#allocation4], 1
    %s2271 = scalar_lea.sflag [#allocation4], 1
    %2272 = vsyncpa %s2271, 1

</llo_original>
